<compile_context>
chip_gen: v5e
topology: v5e:2x2
jax: 0.10.0
libtpu: 0.0.40
codegen_flags: <defaults>
</compile_context>

<pallas_src>
import jax
import jax.numpy as jnp
import numpy as np
from jax.experimental import pallas as pl
from jax.experimental.pallas import tpu as pltpu

LEVELS = 25  # forward() calls self.descritization(x, 25)


def _round_up(v, m):
    return ((v + m - 1) // m) * m


def _default_fold():
    # F*H should match the MXU tile width: 256 (v6e/v7x) -> F=8, 128 (v5e) -> F=4.
    try:
        kind = jax.devices()[0].device_kind.lower()
        if ("v5 lite" in kind) or ("v5e" in kind) or ("v5litepod" in kind):
            return 4
    except Exception:
        pass
    return 8


def d2net_kernel(stats_ref, x_ref, w1_ref, b1_ref, w2_ref, b2_ref,
                 w3_ref, b3_ref, seg_ref, y_ref):
    # ---- closed-form equal-width discretization (global column stats) ----
    x = x_ref[...]                                   # (TR, F*D_in) f32
    stats = stats_ref[...]                           # (2,  F*D_in) f32
    t = (x - stats[0:1, :]) * stats[1:2, :]
    dis = jnp.clip(jnp.ceil(t) - 1.0, 0.0, float(LEVELS - 1))

    # ---- MLP hot path: bf16 operands on the MXU, f32 accumulation ----
    h = jnp.dot(dis.astype(jnp.bfloat16), w1_ref[...],
                preferred_element_type=jnp.float32) + b1_ref[...]
    h = jnp.maximum(h, 0.0)

    # Hoist the reused linear2 weight load and the bias broadcast out of the
    # unrolled 5x loop.
    w2 = w2_ref[...]
    b2 = jnp.broadcast_to(b2_ref[...], h.shape)
    for _ in range(5):                               # linear2 reused 5 times
        h = jnp.dot(h.astype(jnp.bfloat16), w2,
                    preferred_element_type=jnp.float32) + b2
        h = jnp.maximum(h, 0.0)

    a = jnp.dot(h.astype(jnp.bfloat16), w3_ref[...],
                preferred_element_type=jnp.float32) + b3_ref[...]

    # ---- per-segment softmax in the folded layout ----
    # Subtracting the folded-row max is softmax-invariant within each D_out
    # segment and prevents overflow.  Exact per-segment sums (broadcast back
    # to every lane of the segment) come from one tiny f32 matmul against a
    # block-diagonal ones matrix.
    row_max = jnp.max(a, axis=-1, keepdims=True)
    e = jnp.exp(a - row_max)
    s = jnp.dot(e, seg_ref[...], preferred_element_type=jnp.float32)
    s = jnp.maximum(s, 1e-30)                        # NaN guard (see header)
    y_ref[...] = e * pl.reciprocal(s, approx=True)


def d2net_forward(x, w1, b1, w2, b2, w3, b3, *, fold=None, tile_rows=None):
    N, D_in = x.shape
    H = w1.shape[1]
    D_out = w3.shape[1]

    F = _default_fold() if fold is None else fold
    L_in, L_h, L_out = F * D_in, F * H, F * D_out

    # Global (whole-batch) per-column stats, hoisted out of the kernel so the
    # kernel can be tiled over N without changing semantics.  Merged into one
    # lane-dense (2, F*D_in) constant slab: row 0 = col_min, row 1 = scale.
    col_min = jnp.min(x, axis=0, keepdims=True)                 # (1, D_in)
    col_rng = jnp.max(x, axis=0, keepdims=True) - col_min
    scale = jnp.where(col_rng > 0.0,
                      float(LEVELS) / col_rng, 0.0).astype(jnp.float32)
    stats = jnp.concatenate([jnp.tile(col_min, (1, F)),
                             jnp.tile(scale, (1, F))], axis=0)  # (2, F*D_in)

    # Block-diagonal folded weights (bf16 MXU operands) + tiled biases (f32).
    eye = jnp.eye(F, dtype=jnp.float32)
    w1f = jnp.kron(eye, w1).astype(jnp.bfloat16)                # (F*D_in, F*H)
    w2f = jnp.kron(eye, w2).astype(jnp.bfloat16)                # (F*H,  F*H)
    w3f = jnp.kron(eye, w3).astype(jnp.bfloat16)                # (F*H,  F*D_out)
    b1f = jnp.tile(b1, (1, F))
    b2f = jnp.tile(b2, (1, F))
    b3f = jnp.tile(b3, (1, F))
    seg = jnp.kron(eye, jnp.ones((D_out, D_out), jnp.float32))  # segment-sum

    # Folded-row tiling: big tiles amortize per-step overhead / MXU drain;
    # cap near Nf/2 so the grid keeps >=2 steps for v7x's two TensorCores.
    Nf = pl.cdiv(N, F)
    if tile_rows is None:
        tile_rows = 1024                        # = 8192 original rows at F=8
    tile_rows = _round_up(max(8, tile_rows), 8)
    tile_rows = max(8, min(tile_rows, _round_up(pl.cdiv(Nf, 2), 8)))

    Nf_pad = _round_up(Nf, tile_rows)
    n_pad = Nf_pad * F - N
    if n_pad:
        x = jnp.pad(x, ((0, n_pad), (0, 0)))    # padded rows sliced off below
    xf = x.reshape(Nf_pad, L_in)                # row-major fold -> free

    grid = (Nf_pad // tile_rows,)
    in_specs = [
        pl.BlockSpec((2, L_in), lambda i: (0, 0)),          # stats (min;scale)
        pl.BlockSpec((tile_rows, L_in), lambda i: (i, 0)),  # folded x (tiled)
        pl.BlockSpec((L_in, L_h), lambda i: (0, 0)),        # W1'  (VMEM-resident)
        pl.BlockSpec((1, L_h), lambda i: (0, 0)),           # b1'
        pl.BlockSpec((L_h, L_h), lambda i: (0, 0)),         # W2'
        pl.BlockSpec((1, L_h), lambda i: (0, 0)),           # b2'
        pl.BlockSpec((L_h, L_out), lambda i: (0, 0)),       # W3'
        pl.BlockSpec((1, L_out), lambda i: (0, 0)),         # b3'
        pl.BlockSpec((L_out, L_out), lambda i: (0, 0)),     # block-diag ones
    ]
    out_specs = pl.BlockSpec((tile_rows, L_out), lambda i: (i, 0))

    yf = pl.pallas_call(
        d2net_kernel,
        out_shape=jax.ShapeDtypeStruct((Nf_pad, L_out), jnp.float32),
        grid=grid,
        in_specs=in_specs,
        out_specs=out_specs,
        compiler_params=pltpu.CompilerParams(
            # Batch (folded-row) axis is embarrassingly parallel -> megacore
            # sharding on v7x; harmless on v5e/v6e.  Footprint is <2 MiB so
            # the default scoped VMEM limit is left untouched.
            dimension_semantics=("parallel",),
        ),
    )(stats, xf, w1f, b1f, w2f, b2f, w3f, b3f, seg)

    # Unfold: row-major reshape is free (same bytes in HBM); drop padded rows.
    return yf.reshape(Nf_pad * F, D_out)[:N]


def d2net_reference(x, w1, b1, w2, b2, w3, b3):
    """Pure-JAX reference mirroring the torch forward pass, run at matching
    (bf16-operand / f32-accumulate) matmul precision so the check stays tight."""
    col_min = jnp.min(x, axis=0, keepdims=True)
    col_rng = jnp.max(x, axis=0, keepdims=True) - col_min
    scale = jnp.where(col_rng > 0.0, float(LEVELS) / col_rng, 0.0)
    t = (x - col_min) * scale
    dis = jnp.clip(jnp.ceil(t) - 1.0, 0.0, float(LEVELS - 1))

    bf = jnp.bfloat16
    h = jnp.maximum(jnp.dot(dis.astype(bf), w1.astype(bf),
                            preferred_element_type=jnp.float32) + b1, 0.0)
    for _ in range(5):
        h = jnp.maximum(jnp.dot(h.astype(bf), w2.astype(bf),
                                preferred_element_type=jnp.float32) + b2, 0.0)
    a = jnp.dot(h.astype(bf), w3.astype(bf),
                preferred_element_type=jnp.float32) + b3
    return jax.nn.softmax(a, axis=-1)


def init_linear(key, d_in, d_out):
    """Deterministic init mimicking torch.nn.Linear (uniform +-1/sqrt(fan_in)).
    Weight stored as (d_in, d_out) so the kernel computes x @ W."""
    kw, kb = jax.random.split(key)
    bound = 1.0 / np.sqrt(d_in)
    w = jax.random.uniform(kw, (d_in, d_out), jnp.float32, -bound, bound)
    b = jax.random.uniform(kb, (1, d_out), jnp.float32, -bound, bound)
    return w, b


if __name__ == "__main__":
    # Shapes consistent with the module; N chosen so the folded grid has two
    # steps (exercising the pipelined / parallel path) at small size.
    N, D_in, H, D_out = 512, 16, 32, 4

    key = jax.random.PRNGKey(0)
    kx, k1, k2, k3 = jax.random.split(key, 4)

    x = jax.random.normal(kx, (N, D_in), jnp.float32)
    w1, b1 = init_linear(k1, D_in, H)     # linear1
    w2, b2 = init_linear(k2, H, H)        # linear2 (reused 5x in forward)
    w3, b3 = init_linear(k3, H, D_out)    # linear3
    # lineard2 exists in __init__ but is never used in forward -> omitted.

    y = d2net_forward(x, w1, b1, w2, b2, w3, b3)
    y = jax.block_until_ready(y)

    y_ref = d2net_reference(x, w1, b1, w2, b2, w3, b3)
    np.testing.assert_allclose(np.asarray(y), np.asarray(y_ref),
                               rtol=2e-3, atol=2e-3)

    print("KERNEL_OK")
</pallas_src>

<mosaic_0001>
module attributes {stable_mosaic.version = 11 : i64} {
  func.func @d2net_kernel(%arg0: i32, %arg1: memref<2x128xf32, #tpu.memory_space<vmem>>, %arg2: memref<32x128xf32, #tpu.memory_space<vmem>>, %arg3: memref<128x256xbf16, #tpu.memory_space<vmem>>, %arg4: memref<1x256xf32, #tpu.memory_space<vmem>>, %arg5: memref<256x256xbf16, #tpu.memory_space<vmem>>, %arg6: memref<1x256xf32, #tpu.memory_space<vmem>>, %arg7: memref<256x32xbf16, #tpu.memory_space<vmem>>, %arg8: memref<1x32xf32, #tpu.memory_space<vmem>>, %arg9: memref<32x32xf32, #tpu.memory_space<vmem>>, %arg10: memref<32x32xf32, #tpu.memory_space<vmem>>) attributes {dimension_semantics = [#tpu.dimension_semantics<parallel>], iteration_bounds = array<i64: 2>, scalar_prefetch = 0 : i64, scratch_operands = 0 : i64, tpu.core_type = #tpu.core_type<tc>, window_params = [{pipeline_mode = #tpu.pipeline_mode<synchronous>, transform_indices = @transform_0, window_bounds = array<i64: 2, 128>}, {transform_indices = @transform_1, window_bounds = array<i64: 32, 128>}, {pipeline_mode = #tpu.pipeline_mode<synchronous>, transform_indices = @transform_2, window_bounds = array<i64: 128, 256>}, {pipeline_mode = #tpu.pipeline_mode<synchronous>, transform_indices = @transform_3, window_bounds = array<i64: 1, 256>}, {pipeline_mode = #tpu.pipeline_mode<synchronous>, transform_indices = @transform_4, window_bounds = array<i64: 256, 256>}, {pipeline_mode = #tpu.pipeline_mode<synchronous>, transform_indices = @transform_5, window_bounds = array<i64: 1, 256>}, {pipeline_mode = #tpu.pipeline_mode<synchronous>, transform_indices = @transform_6, window_bounds = array<i64: 256, 32>}, {pipeline_mode = #tpu.pipeline_mode<synchronous>, transform_indices = @transform_7, window_bounds = array<i64: 1, 32>}, {pipeline_mode = #tpu.pipeline_mode<synchronous>, transform_indices = @transform_8, window_bounds = array<i64: 32, 32>}, {transform_indices = @transform_9, window_bounds = array<i64: 32, 32>}]} {
    %c0 = arith.constant 0 : index
    %c0_0 = arith.constant 0 : index
    %0 = vector.load %arg2[%c0, %c0_0] : memref<32x128xf32, #tpu.memory_space<vmem>>, vector<32x128xf32>
    %c0_1 = arith.constant 0 : index
    %c0_2 = arith.constant 0 : index
    %1 = vector.load %arg1[%c0_1, %c0_2] : memref<2x128xf32, #tpu.memory_space<vmem>>, vector<2x128xf32>
    %2 = vector.extract_strided_slice %1 {offsets = [0, 0], sizes = [1, 128], strides = [1, 1]} : vector<2x128xf32> to vector<1x128xf32>
    %3 = vector.broadcast %2 : vector<1x128xf32> to vector<32x128xf32>
    %4 = arith.subf %0, %3 : vector<32x128xf32>
    %5 = vector.extract_strided_slice %1 {offsets = [1, 0], sizes = [1, 128], strides = [1, 1]} : vector<2x128xf32> to vector<1x128xf32>
    %6 = vector.broadcast %5 : vector<1x128xf32> to vector<32x128xf32>
    %7 = arith.mulf %4, %6 : vector<32x128xf32>
    %8 = math.ceil %7 : vector<32x128xf32>
    %cst = arith.constant 1.000000e+00 : f32
    %9 = vector.broadcast %cst : f32 to vector<32x128xf32>
    %10 = arith.subf %8, %9 : vector<32x128xf32>
    %cst_3 = arith.constant 0.000000e+00 : f32
    %cst_4 = arith.constant 2.400000e+01 : f32
    %11 = vector.broadcast %cst_3 : f32 to vector<32x128xf32>
    %12 = arith.maximumf %11, %10 : vector<32x128xf32>
    %13 = vector.broadcast %cst_4 : f32 to vector<32x128xf32>
    %14 = arith.minimumf %13, %12 : vector<32x128xf32>
    %15 = arith.truncf %14 : vector<32x128xf32> to vector<32x128xbf16>
    %c0_5 = arith.constant 0 : index
    %c0_6 = arith.constant 0 : index
    %16 = vector.load %arg3[%c0_5, %c0_6] : memref<128x256xbf16, #tpu.memory_space<vmem>>, vector<128x256xbf16>
    %cst_7 = arith.constant dense<0.000000e+00> : vector<32x256xf32>
    %17 = tpu.matmul %15, %16, %cst_7 {dimension_numbers = #tpu.dot_dimension_numbers<[1], [0], [0], [1], [0, 0, 1, 1], [], []>} : vector<32x128xbf16>, vector<128x256xbf16>, vector<32x256xf32> -> vector<32x256xf32>
    %c0_8 = arith.constant 0 : index
    %c0_9 = arith.constant 0 : index
    %18 = vector.load %arg4[%c0_8, %c0_9] : memref<1x256xf32, #tpu.memory_space<vmem>>, vector<1x256xf32>
    %19 = vector.broadcast %18 : vector<1x256xf32> to vector<32x256xf32>
    %20 = arith.addf %17, %19 : vector<32x256xf32>
    %cst_10 = arith.constant 0.000000e+00 : f32
    %21 = vector.broadcast %cst_10 : f32 to vector<32x256xf32>
    %22 = arith.maximumf %20, %21 : vector<32x256xf32>
    %c0_11 = arith.constant 0 : index
    %c0_12 = arith.constant 0 : index
    %23 = vector.load %arg5[%c0_11, %c0_12] : memref<256x256xbf16, #tpu.memory_space<vmem>>, vector<256x256xbf16>
    %c0_13 = arith.constant 0 : index
    %c0_14 = arith.constant 0 : index
    %24 = vector.load %arg6[%c0_13, %c0_14] : memref<1x256xf32, #tpu.memory_space<vmem>>, vector<1x256xf32>
    %25 = vector.shape_cast %24 : vector<1x256xf32> to vector<1x256xf32>
    %26 = vector.broadcast %25 : vector<1x256xf32> to vector<32x256xf32>
    %27 = arith.truncf %22 : vector<32x256xf32> to vector<32x256xbf16>
    %cst_15 = arith.constant dense<0.000000e+00> : vector<32x256xf32>
    %28 = tpu.matmul %27, %23, %cst_15 {dimension_numbers = #tpu.dot_dimension_numbers<[1], [0], [0], [1], [0, 0, 1, 1], [], []>} : vector<32x256xbf16>, vector<256x256xbf16>, vector<32x256xf32> -> vector<32x256xf32>
    %29 = arith.addf %28, %26 : vector<32x256xf32>
    %cst_16 = arith.constant 0.000000e+00 : f32
    %30 = vector.broadcast %cst_16 : f32 to vector<32x256xf32>
    %31 = arith.maximumf %29, %30 : vector<32x256xf32>
    %32 = arith.truncf %31 : vector<32x256xf32> to vector<32x256xbf16>
    %cst_17 = arith.constant dense<0.000000e+00> : vector<32x256xf32>
    %33 = tpu.matmul %32, %23, %cst_17 {dimension_numbers = #tpu.dot_dimension_numbers<[1], [0], [0], [1], [0, 0, 1, 1], [], []>} : vector<32x256xbf16>, vector<256x256xbf16>, vector<32x256xf32> -> vector<32x256xf32>
    %34 = arith.addf %33, %26 : vector<32x256xf32>
    %cst_18 = arith.constant 0.000000e+00 : f32
    %35 = vector.broadcast %cst_18 : f32 to vector<32x256xf32>
    %36 = arith.maximumf %34, %35 : vector<32x256xf32>
    %37 = arith.truncf %36 : vector<32x256xf32> to vector<32x256xbf16>
    %cst_19 = arith.constant dense<0.000000e+00> : vector<32x256xf32>
    %38 = tpu.matmul %37, %23, %cst_19 {dimension_numbers = #tpu.dot_dimension_numbers<[1], [0], [0], [1], [0, 0, 1, 1], [], []>} : vector<32x256xbf16>, vector<256x256xbf16>, vector<32x256xf32> -> vector<32x256xf32>
    %39 = arith.addf %38, %26 : vector<32x256xf32>
    %cst_20 = arith.constant 0.000000e+00 : f32
    %40 = vector.broadcast %cst_20 : f32 to vector<32x256xf32>
    %41 = arith.maximumf %39, %40 : vector<32x256xf32>
    %42 = arith.truncf %41 : vector<32x256xf32> to vector<32x256xbf16>
    %cst_21 = arith.constant dense<0.000000e+00> : vector<32x256xf32>
    %43 = tpu.matmul %42, %23, %cst_21 {dimension_numbers = #tpu.dot_dimension_numbers<[1], [0], [0], [1], [0, 0, 1, 1], [], []>} : vector<32x256xbf16>, vector<256x256xbf16>, vector<32x256xf32> -> vector<32x256xf32>
    %44 = arith.addf %43, %26 : vector<32x256xf32>
    %cst_22 = arith.constant 0.000000e+00 : f32
    %45 = vector.broadcast %cst_22 : f32 to vector<32x256xf32>
    %46 = arith.maximumf %44, %45 : vector<32x256xf32>
    %47 = arith.truncf %46 : vector<32x256xf32> to vector<32x256xbf16>
    %cst_23 = arith.constant dense<0.000000e+00> : vector<32x256xf32>
    %48 = tpu.matmul %47, %23, %cst_23 {dimension_numbers = #tpu.dot_dimension_numbers<[1], [0], [0], [1], [0, 0, 1, 1], [], []>} : vector<32x256xbf16>, vector<256x256xbf16>, vector<32x256xf32> -> vector<32x256xf32>
    %49 = arith.addf %48, %26 : vector<32x256xf32>
    %cst_24 = arith.constant 0.000000e+00 : f32
    %50 = vector.broadcast %cst_24 : f32 to vector<32x256xf32>
    %51 = arith.maximumf %49, %50 : vector<32x256xf32>
    %52 = arith.truncf %51 : vector<32x256xf32> to vector<32x256xbf16>
    %c0_25 = arith.constant 0 : index
    %c0_26 = arith.constant 0 : index
    %53 = vector.load %arg7[%c0_25, %c0_26] : memref<256x32xbf16, #tpu.memory_space<vmem>>, vector<256x32xbf16>
    %cst_27 = arith.constant dense<0.000000e+00> : vector<32x32xf32>
    %54 = tpu.matmul %52, %53, %cst_27 {dimension_numbers = #tpu.dot_dimension_numbers<[1], [0], [0], [1], [0, 0, 1, 1], [], []>} : vector<32x256xbf16>, vector<256x32xbf16>, vector<32x32xf32> -> vector<32x32xf32>
    %c0_28 = arith.constant 0 : index
    %c0_29 = arith.constant 0 : index
    %55 = vector.load %arg8[%c0_28, %c0_29] : memref<1x32xf32, #tpu.memory_space<vmem>>, vector<1x32xf32>
    %56 = vector.broadcast %55 : vector<1x32xf32> to vector<32x32xf32>
    %57 = arith.addf %54, %56 : vector<32x32xf32>
    %cst_30 = arith.constant dense<0xFF800000> : vector<32xf32>
    %58 = vector.multi_reduction <maximumf>, %57, %cst_30 [1] : vector<32x32xf32> to vector<32xf32>
    %59 = vector.shape_cast %58 : vector<32xf32> to vector<32x1xf32>
    %60 = vector.broadcast %59 : vector<32x1xf32> to vector<32x32xf32>
    %61 = arith.subf %57, %60 : vector<32x32xf32>
    %62 = math.exp %61 : vector<32x32xf32>
    %c0_31 = arith.constant 0 : index
    %c0_32 = arith.constant 0 : index
    %63 = vector.load %arg9[%c0_31, %c0_32] : memref<32x32xf32, #tpu.memory_space<vmem>>, vector<32x32xf32>
    %cst_33 = arith.constant dense<0.000000e+00> : vector<32x32xf32>
    %64 = tpu.matmul %62, %63, %cst_33 {dimension_numbers = #tpu.dot_dimension_numbers<[1], [0], [0], [1], [0, 0, 1, 1], [], []>} : vector<32x32xf32>, vector<32x32xf32>, vector<32x32xf32> -> vector<32x32xf32>
    %cst_34 = arith.constant 1.000000e-30 : f32
    %65 = vector.broadcast %cst_34 : f32 to vector<32x32xf32>
    %66 = arith.maximumf %64, %65 : vector<32x32xf32>
    %67 = tpu.reciprocal %66 {approx = true} : vector<32x32xf32> -> vector<32x32xf32>
    %68 = arith.mulf %62, %67 : vector<32x32xf32>
    %c0_35 = arith.constant 0 : index
    %c0_36 = arith.constant 0 : index
    %69 = vector.load %arg10[%c0_35, %c0_36] : memref<32x32xf32, #tpu.memory_space<vmem>>, vector<32x32xf32>
    tpu.vector_store %arg10[%c0_35, %c0_36], %68 {strides = array<i32>} : memref<32x32xf32, #tpu.memory_space<vmem>>, vector<32x32xf32>,
    return
  }
  func.func @transform_0(%arg0: i32) -> (i32, i32) {
    %c0_i32 = arith.constant 0 : i32
    %c0_i32_0 = arith.constant 0 : i32
    %c0_i32_1 = arith.constant 0 : i32
    return %c0_i32, %c0_i32_0 : i32, i32
  }
  func.func @transform_1(%arg0: i32) -> (i32, i32) {
    %c0_i32 = arith.constant 0 : i32
    %c0_i32_0 = arith.constant 0 : i32
    return %arg0, %c0_i32 : i32, i32
  }
  func.func @transform_2(%arg0: i32) -> (i32, i32) {
    %c0_i32 = arith.constant 0 : i32
    %c0_i32_0 = arith.constant 0 : i32
    %c0_i32_1 = arith.constant 0 : i32
    return %c0_i32, %c0_i32_0 : i32, i32
  }
  func.func @transform_3(%arg0: i32) -> (i32, i32) {
    %c0_i32 = arith.constant 0 : i32
    %c0_i32_0 = arith.constant 0 : i32
    %c0_i32_1 = arith.constant 0 : i32
    return %c0_i32, %c0_i32_0 : i32, i32
  }
  func.func @transform_4(%arg0: i32) -> (i32, i32) {
    %c0_i32 = arith.constant 0 : i32
    %c0_i32_0 = arith.constant 0 : i32
    %c0_i32_1 = arith.constant 0 : i32
    return %c0_i32, %c0_i32_0 : i32, i32
  }
  func.func @transform_5(%arg0: i32) -> (i32, i32) {
    %c0_i32 = arith.constant 0 : i32
    %c0_i32_0 = arith.constant 0 : i32
    %c0_i32_1 = arith.constant 0 : i32
    return %c0_i32, %c0_i32_0 : i32, i32
  }
  func.func @transform_6(%arg0: i32) -> (i32, i32) {
    %c0_i32 = arith.constant 0 : i32
    %c0_i32_0 = arith.constant 0 : i32
    %c0_i32_1 = arith.constant 0 : i32
    return %c0_i32, %c0_i32_0 : i32, i32
  }
  func.func @transform_7(%arg0: i32) -> (i32, i32) {
    %c0_i32 = arith.constant 0 : i32
    %c0_i32_0 = arith.constant 0 : i32
    %c0_i32_1 = arith.constant 0 : i32
    return %c0_i32, %c0_i32_0 : i32, i32
  }
  func.func @transform_8(%arg0: i32) -> (i32, i32) {
    %c0_i32 = arith.constant 0 : i32
    %c0_i32_0 = arith.constant 0 : i32
    %c0_i32_1 = arith.constant 0 : i32
    return %c0_i32, %c0_i32_0 : i32, i32
  }
  func.func @transform_9(%arg0: i32) -> (i32, i32) {
    %c0_i32 = arith.constant 0 : i32
    %c0_i32_0 = arith.constant 0 : i32
    return %arg0, %c0_i32 : i32, i32
  }
}

</mosaic_0001>

<llo_original>
// kernel: tpu_custom_call.1
$region0: #{tpu_custom_call.1}
  #allocation0 [shape = 'u32[]', space=smem, size = 0x4, offset = 0x4, fixed_abs, tag = 'smem constant byte address 0x4 - core index']
  #allocation1 [shape = 'u32[72,128]{1,0:T(1,128)}', space=vmem, size = 0x9000, scoped, tag = 'internal scratch']
  %s0 = inlined_call_operand.hbm [shape: f32[2,128], index: 0, kind: input, shape index: {}]
  %s1 = inlined_call_operand.hbm [shape: f32[64,128], index: 1, kind: input, shape index: {}]
  %s2 = inlined_call_operand.vmem [shape: bf16[128,256], index: 2, kind: input, shape index: {}]
  %s3 = inlined_call_operand.hbm [shape: f32[1,256], index: 3, kind: input, shape index: {}]
  %s4 = inlined_call_operand.hbm [shape: bf16[256,256], index: 4, kind: input, shape index: {}]
  %s5 = inlined_call_operand.vmem [shape: f32[1,256], index: 5, kind: input, shape index: {}]
  %s6 = inlined_call_operand.vmem [shape: bf16[256,32], index: 6, kind: input, shape index: {}]
  %s7 = inlined_call_operand.vmem [shape: f32[1,32], index: 7, kind: input, shape index: {}]
  %s8 = inlined_call_operand.vmem [shape: f32[32,32], index: 8, kind: input, shape index: {}]
  %s9 = inlined_call_operand.vmem [shape: f32[64,32], index: 9, kind: output, shape index: {}]
  %s10 = sld [smem:[#allocation0]]
  $region85: #{tpu_custom_call.1} parent=0
    _
  %s12 = ssub.s32 1, %s10
  %s13 = scalar_select 0, %s12, %s10
  $region1: #{tpu_custom_call.1} parent=0
    #allocation2 [shape = 'u8[1024]{0}', space=vmem, size = 0x400, scoped, tag = 'input window, operand 0, single buffered']
    #allocation3 [shape = 's32[2]{0}', space=sflag, size = 0x8, scoped, tag = 'scoped memory for tpu_custom_call.1']
    #allocation4 [shape = 'u8[32768]{0}', space=vmem, size = 0x8000, scoped, tag = 'input window, operand 1']
    #allocation5 [shape = 's32[2]{0}', space=sflag, size = 0x8, scoped, tag = 'scoped memory for tpu_custom_call.1']
    #allocation6 [shape = 'u8[1024]{0}', space=vmem, size = 0x400, scoped, tag = 'input window, operand 3, single buffered']
    #allocation7 [shape = 'u8[131072]{0}', space=vmem, size = 0x20000, scoped, tag = 'input window, operand 4, single buffered']
    #allocation8 [shape = 's32[1]{0}', space=sflag, size = 0x4, scoped, tag = 'scoped memory for tpu_custom_call.1']
    %14 = vsyncpa [#allocation3], 0
    %15 = vsyncpa [#allocation5], 0
    %s16 = scalar_lea.sflag [#allocation5], 1
    %17 = vsyncpa %s16, 0
    %18 = vsyncpa [#allocation8], 0
    loop: start=0, step=1, limit=4
    $region2: #{tpu_custom_call.1} parent=1 // loop_pre_header
      _
    $region3: #{tpu_custom_call.1} parent=1 // loop_header
      %s20 = sphi 0, %s24
      %p21 = scmp.ge.s32.totalorder %s20, 4
      %s28 = sphi 0, %s28
      %s30 = sphi 0, %s28
      %s31 = sphi 0, %s30
      %s45 = sphi 0, %s31
      %s51 = sphi 0, %s53
      %s54 = sphi 0, %s51
      %s55 = sphi 0, %s54
      %s71 = sphi 0, %s55
      %s75 = sphi 0, %s75
      %s77 = sphi 0, %s75
      %s78 = sphi 0, %s77
      %s92 = sphi 0, %s78
      %s96 = sphi 0, %s96
      %s98 = sphi 0, %s96
      %s99 = sphi 0, %s98
      %s113 = sphi 0, %s99
      %s117 = sphi 0, %s117
      %s119 = sphi 0, %s117
      %s120 = sphi 0, %s119
      %s134 = sphi 0, %s120
      %s138 = sphi 0, %s138
      %s140 = sphi 0, %s138
      %s141 = sphi 0, %s140
      %s155 = sphi 0, %s141
      %s159 = sphi 0, %s159
      %s161 = sphi 0, %s159
      %s162 = sphi 0, %s161
      %s176 = sphi 0, %s162
      %s180 = sphi 0, %s180
      %s182 = sphi 0, %s180
      %s183 = sphi 0, %s182
      %s197 = sphi 0, %s183
      %s201 = sphi 0, %s201
      %s203 = sphi 0, %s201
      %s204 = sphi 0, %s203
      %s218 = sphi 0, %s204
      %s224 = sphi 0, %s226
      %s227 = sphi 0, %s224
      %s228 = sphi 0, %s227
      %s244 = sphi 0, %s228
    $region4: #{tpu_custom_call.1} parent=1 // loop_header_branch
      %23 = sbr.rel (%p21) target = $region8
    $region5: #{tpu_custom_call.1} parent=1 // loop_body
      %s25 = ssub.s32 %s20, 1
      %s26 = ssub.s32 %s20, 2
      %s27 = sadd.s32 %s20, 1
      %s29 = sadd.s32 %s28, 1
      %p32 = scmp.eq.s32.totalorder %s20, 1
      %p33 = scmp.ne.s32.totalorder %s28, %s30
      %p34 = scmp.eq.s32.totalorder %s20, 0
      %p35 = por %p33, %p34
      %p36 = scmp.ne.s32.totalorder %s28, %s30
      %p37 = scmp.eq.s32.totalorder %s25, 1
      %p38 = por %p36, %p37
      %p39 = scmp.ne.s32.totalorder %s30, %s31
      %p40 = scmp.eq.s32.totalorder %s25, 0
      %p41 = por %p39, %p40
      %p42 = scmp.ne.s32.totalorder %s30, %s31
      %p43 = scmp.eq.s32.totalorder %s26, 1
      %p44 = por %p42, %p43
      %p46 = scmp.ne.s32.totalorder %s31, %s45
      %p47 = scmp.eq.s32.totalorder %s26, 0
      %p48 = por %p46, %p47
      %s49 = ssub.s32 %s20, %s27
      %p50 = scmp.eq.s32.totalorder %s49, 0
      %s52 = sadd.s32 %s51, 1
      %s53 = scalar_select %p50, %s51, %s52
      %p56 = pneg %p50
      %p57 = scmp.eq.s32.totalorder %s20, 1
      %p58 = por %p56, %p57
      %p59 = scmp.ne.s32.totalorder %s51, %s54
      %p60 = scmp.eq.s32.totalorder %s20, 0
      %p61 = por %p59, %p60
      %p62 = scmp.ne.s32.totalorder %s51, %s54
      %p63 = scmp.eq.s32.totalorder %s25, 1
      %p64 = por %p62, %p63
      %p65 = scmp.ne.s32.totalorder %s54, %s55
      %p66 = scmp.eq.s32.totalorder %s25, 0
      %p67 = por %p65, %p66
      %p68 = scmp.ne.s32.totalorder %s54, %s55
      %p69 = scmp.eq.s32.totalorder %s26, 1
      %p70 = por %p68, %p69
      %p72 = scmp.ne.s32.totalorder %s55, %s71
      %p73 = scmp.eq.s32.totalorder %s26, 0
      %p74 = por %p72, %p73
      %s76 = sadd.s32 %s75, 1
      %p79 = scmp.eq.s32.totalorder %s20, 1
      %p80 = scmp.ne.s32.totalorder %s75, %s77
      %p81 = scmp.eq.s32.totalorder %s20, 0
      %p82 = por %p80, %p81
      %p83 = scmp.ne.s32.totalorder %s75, %s77
      %p84 = scmp.eq.s32.totalorder %s25, 1
      %p85 = por %p83, %p84
      %p86 = scmp.ne.s32.totalorder %s77, %s78
      %p87 = scmp.eq.s32.totalorder %s25, 0
      %p88 = por %p86, %p87
      %p89 = scmp.ne.s32.totalorder %s77, %s78
      %p90 = scmp.eq.s32.totalorder %s26, 1
      %p91 = por %p89, %p90
      %p93 = scmp.ne.s32.totalorder %s78, %s92
      %p94 = scmp.eq.s32.totalorder %s26, 0
      %p95 = por %p93, %p94
      %s97 = sadd.s32 %s96, 1
      %p100 = scmp.eq.s32.totalorder %s20, 1
      %p101 = scmp.ne.s32.totalorder %s96, %s98
      %p102 = scmp.eq.s32.totalorder %s20, 0
      %p103 = por %p101, %p102
      %p104 = scmp.ne.s32.totalorder %s96, %s98
      %p105 = scmp.eq.s32.totalorder %s25, 1
      %p106 = por %p104, %p105
      %p107 = scmp.ne.s32.totalorder %s98, %s99
      %p108 = scmp.eq.s32.totalorder %s25, 0
      %p109 = por %p107, %p108
      %p110 = scmp.ne.s32.totalorder %s98, %s99
      %p111 = scmp.eq.s32.totalorder %s26, 1
      %p112 = por %p110, %p111
      %p114 = scmp.ne.s32.totalorder %s99, %s113
      %p115 = scmp.eq.s32.totalorder %s26, 0
      %p116 = por %p114, %p115
      %s118 = sadd.s32 %s117, 1
      %p121 = scmp.eq.s32.totalorder %s20, 1
      %p122 = scmp.ne.s32.totalorder %s117, %s119
      %p123 = scmp.eq.s32.totalorder %s20, 0
      %p124 = por %p122, %p123
      %p125 = scmp.ne.s32.totalorder %s117, %s119
      %p126 = scmp.eq.s32.totalorder %s25, 1
      %p127 = por %p125, %p126
      %p128 = scmp.ne.s32.totalorder %s119, %s120
      %p129 = scmp.eq.s32.totalorder %s25, 0
      %p130 = por %p128, %p129
      %p131 = scmp.ne.s32.totalorder %s119, %s120
      %p132 = scmp.eq.s32.totalorder %s26, 1
      %p133 = por %p131, %p132
      %p135 = scmp.ne.s32.totalorder %s120, %s134
      %p136 = scmp.eq.s32.totalorder %s26, 0
      %p137 = por %p135, %p136
      %s139 = sadd.s32 %s138, 1
      %p142 = scmp.eq.s32.totalorder %s20, 1
      %p143 = scmp.ne.s32.totalorder %s138, %s140
      %p144 = scmp.eq.s32.totalorder %s20, 0
      %p145 = por %p143, %p144
      %p146 = scmp.ne.s32.totalorder %s138, %s140
      %p147 = scmp.eq.s32.totalorder %s25, 1
      %p148 = por %p146, %p147
      %p149 = scmp.ne.s32.totalorder %s140, %s141
      %p150 = scmp.eq.s32.totalorder %s25, 0
      %p151 = por %p149, %p150
      %p152 = scmp.ne.s32.totalorder %s140, %s141
      %p153 = scmp.eq.s32.totalorder %s26, 1
      %p154 = por %p152, %p153
      %p156 = scmp.ne.s32.totalorder %s141, %s155
      %p157 = scmp.eq.s32.totalorder %s26, 0
      %p158 = por %p156, %p157
      %s160 = sadd.s32 %s159, 1
      %p163 = scmp.eq.s32.totalorder %s20, 1
      %p164 = scmp.ne.s32.totalorder %s159, %s161
      %p165 = scmp.eq.s32.totalorder %s20, 0
      %p166 = por %p164, %p165
      %p167 = scmp.ne.s32.totalorder %s159, %s161
      %p168 = scmp.eq.s32.totalorder %s25, 1
      %p169 = por %p167, %p168
      %p170 = scmp.ne.s32.totalorder %s161, %s162
      %p171 = scmp.eq.s32.totalorder %s25, 0
      %p172 = por %p170, %p171
      %p173 = scmp.ne.s32.totalorder %s161, %s162
      %p174 = scmp.eq.s32.totalorder %s26, 1
      %p175 = por %p173, %p174
      %p177 = scmp.ne.s32.totalorder %s162, %s176
      %p178 = scmp.eq.s32.totalorder %s26, 0
      %p179 = por %p177, %p178
      %s181 = sadd.s32 %s180, 1
      %p184 = scmp.eq.s32.totalorder %s20, 1
      %p185 = scmp.ne.s32.totalorder %s180, %s182
      %p186 = scmp.eq.s32.totalorder %s20, 0
      %p187 = por %p185, %p186
      %p188 = scmp.ne.s32.totalorder %s180, %s182
      %p189 = scmp.eq.s32.totalorder %s25, 1
      %p190 = por %p188, %p189
      %p191 = scmp.ne.s32.totalorder %s182, %s183
      %p192 = scmp.eq.s32.totalorder %s25, 0
      %p193 = por %p191, %p192
      %p194 = scmp.ne.s32.totalorder %s182, %s183
      %p195 = scmp.eq.s32.totalorder %s26, 1
      %p196 = por %p194, %p195
      %p198 = scmp.ne.s32.totalorder %s183, %s197
      %p199 = scmp.eq.s32.totalorder %s26, 0
      %p200 = por %p198, %p199
      %s202 = sadd.s32 %s201, 1
      %p205 = scmp.eq.s32.totalorder %s20, 1
      %p206 = scmp.ne.s32.totalorder %s201, %s203
      %p207 = scmp.eq.s32.totalorder %s20, 0
      %p208 = por %p206, %p207
      %p209 = scmp.ne.s32.totalorder %s201, %s203
      %p210 = scmp.eq.s32.totalorder %s25, 1
      %p211 = por %p209, %p210
      %p212 = scmp.ne.s32.totalorder %s203, %s204
      %p213 = scmp.eq.s32.totalorder %s25, 0
      %p214 = por %p212, %p213
      %p215 = scmp.ne.s32.totalorder %s203, %s204
      %p216 = scmp.eq.s32.totalorder %s26, 1
      %p217 = por %p215, %p216
      %p219 = scmp.ne.s32.totalorder %s204, %s218
      %p220 = scmp.eq.s32.totalorder %s26, 0
      %p221 = por %p219, %p220
      %s222 = ssub.s32 %s20, %s27
      %p223 = scmp.eq.s32.totalorder %s222, 0
      %s225 = sadd.s32 %s224, 1
      %s226 = scalar_select %p223, %s224, %s225
      %p229 = pneg %p223
      %p230 = scmp.eq.s32.totalorder %s20, 1
      %p231 = por %p229, %p230
      %p232 = scmp.ne.s32.totalorder %s224, %s227
      %p233 = scmp.eq.s32.totalorder %s20, 0
      %p234 = por %p232, %p233
      %p235 = scmp.ne.s32.totalorder %s224, %s227
      %p236 = scmp.eq.s32.totalorder %s25, 1
      %p237 = por %p235, %p236
      %p238 = scmp.ne.s32.totalorder %s227, %s228
      %p239 = scmp.eq.s32.totalorder %s25, 0
      %p240 = por %p238, %p239
      %p241 = scmp.ne.s32.totalorder %s227, %s228
      %p242 = scmp.eq.s32.totalorder %s26, 1
      %p243 = por %p241, %p242
      %p245 = scmp.ne.s32.totalorder %s228, %s244
      %p246 = scmp.eq.s32.totalorder %s26, 0
      %p247 = por %p245, %p246
      %p248 = scmp.le.s32.totalorder 1, %s20
      %p249 = scmp.lt.s32.totalorder %s20, 3
      %p250 = pnand %p248, %p249
      %p251 = pneg %p250
      // Predicated region
      $region9: #{tpu_custom_call.1} parent=5 // pred_check
        _
      $region10: #{tpu_custom_call.1} parent=5 // pred_check_branch
        %253 = sbr.rel (%p250) target = $region12
      $region11: #{tpu_custom_call.1} parent=5 // pred_region
        %s254 = ssub.s32 %s20, 1
        // Predicated region
        $region13: #{tpu_custom_call.1} parent=11 // pred_check
          %p255 = pneg %p41
        $region14: #{tpu_custom_call.1} parent=11 // pred_check_branch
          %257 = sbr.rel (%p255) target = $region16
        $region15: #{tpu_custom_call.1} parent=11 // pred_region
          %259 = vsyncadd [#allocation3], 0
          %s261 = sshll.u32 %s0, 4
          %s262 = int_to_ptr.hbm [resolvable:$true] %s261
          %s263 = sshll.u32 [#allocation2], 4
          %s264 = int_to_ptr.vmem [resolvable:$true] %s263
          %266 = dma.hbm_to_vmem [thread:$0]  %s262, 32, %s264, [#allocation3]
        $region16: #{tpu_custom_call.1} parent=11 // pred_fallthru
          _
        // Predicated region
        $region17: #{tpu_custom_call.1} parent=11 // pred_check
          %p267 = pneg %p88
        $region18: #{tpu_custom_call.1} parent=11 // pred_check_branch
          %269 = sbr.rel (%p267) target = $region20
        $region19: #{tpu_custom_call.1} parent=11 // pred_region
          _
        $region20: #{tpu_custom_call.1} parent=11 // pred_fallthru
          _
        // Predicated region
        $region21: #{tpu_custom_call.1} parent=11 // pred_check
          %p270 = pneg %p109
        $region22: #{tpu_custom_call.1} parent=11 // pred_check_branch
          %272 = sbr.rel (%p270) target = $region24
        $region23: #{tpu_custom_call.1} parent=11 // pred_region
          %274 = vsyncadd [#allocation5], 0
          %s276 = sshll.u32 %s3, 4
          %s277 = int_to_ptr.hbm [resolvable:$true] %s276
          %s278 = sshll.u32 [#allocation6], 4
          %s279 = int_to_ptr.vmem [resolvable:$true] %s278
          %281 = dma.hbm_to_vmem [thread:$0]  %s277, 32, %s279, [#allocation5]
        $region24: #{tpu_custom_call.1} parent=11 // pred_fallthru
          _
        // Predicated region
        $region25: #{tpu_custom_call.1} parent=11 // pred_check
          %p282 = pneg %p130
        $region26: #{tpu_custom_call.1} parent=11 // pred_check_branch
          %284 = sbr.rel (%p282) target = $region28
        $region27: #{tpu_custom_call.1} parent=11 // pred_region
          %286 = vsyncadd [#allocation8], 0
          %s287 = sshll.u32 %s4, 4
          %s288 = int_to_ptr.hbm [resolvable:$true] %s287
          %s289 = sshll.u32 [#allocation7], 4
          %s290 = int_to_ptr.vmem [resolvable:$true] %s289
          %295 = dma.hbm_to_vmem [thread:$0]  %s288, 4096, %s290, [#allocation8], 128, 128, 8
        $region28: #{tpu_custom_call.1} parent=11 // pred_fallthru
          _
        // Predicated region
        $region29: #{tpu_custom_call.1} parent=11 // pred_check
          %p296 = pneg %p151
        $region30: #{tpu_custom_call.1} parent=11 // pred_check_branch
          %298 = sbr.rel (%p296) target = $region32
        $region31: #{tpu_custom_call.1} parent=11 // pred_region
          _
        $region32: #{tpu_custom_call.1} parent=11 // pred_fallthru
          _
        // Predicated region
        $region33: #{tpu_custom_call.1} parent=11 // pred_check
          %p299 = pneg %p172
        $region34: #{tpu_custom_call.1} parent=11 // pred_check_branch
          %301 = sbr.rel (%p299) target = $region36
        $region35: #{tpu_custom_call.1} parent=11 // pred_region
          _
        $region36: #{tpu_custom_call.1} parent=11 // pred_fallthru
          _
        // Predicated region
        $region37: #{tpu_custom_call.1} parent=11 // pred_check
          %p302 = pneg %p193
        $region38: #{tpu_custom_call.1} parent=11 // pred_check_branch
          %304 = sbr.rel (%p302) target = $region40
        $region39: #{tpu_custom_call.1} parent=11 // pred_region
          _
        $region40: #{tpu_custom_call.1} parent=11 // pred_fallthru
          _
        // Predicated region
        $region41: #{tpu_custom_call.1} parent=11 // pred_check
          %p305 = pneg %p214
        $region42: #{tpu_custom_call.1} parent=11 // pred_check_branch
          %307 = sbr.rel (%p305) target = $region44
        $region43: #{tpu_custom_call.1} parent=11 // pred_region
          _
        $region44: #{tpu_custom_call.1} parent=11 // pred_fallthru
          _
      $region12: #{tpu_custom_call.1} parent=5 // pred_fallthru
        _
      %p308 = scmp.lt.s32.totalorder %s20, 2
      // Predicated region
      $region45: #{tpu_custom_call.1} parent=5 // pred_check
        %p309 = pneg %p308
      $region46: #{tpu_custom_call.1} parent=5 // pred_check_branch
        %311 = sbr.rel (%p309) target = $region48
      $region47: #{tpu_custom_call.1} parent=5 // pred_region
        // Predicated region
        $region49: #{tpu_custom_call.1} parent=47 // pred_check
          %p312 = pneg %p61
        $region50: #{tpu_custom_call.1} parent=47 // pred_check_branch
          %314 = sbr.rel (%p312) target = $region52
        $region51: #{tpu_custom_call.1} parent=47 // pred_region
          %s315 = sand.u32 %s20, 1
          %s316 = scalar_lea.sflag [#allocation5], %s315
          %s317 = sand.u32 %s51, 1
          %s318 = smul.addr %s317, 32
          %s319 = scalar_lea.vmem [#allocation4], %s318
          %s320 = smul.u32 4, %s20
          %322 = vsyncadd %s316, 0
          %s323 = smul.addr %s320, 8
          %s324 = scalar_lea.hbm %s1, %s323
          %s325 = sshll.u32 %s324, 4
          %s326 = int_to_ptr.hbm [resolvable:$true] %s325
          %s327 = sshll.u32 %s319, 4
          %s328 = int_to_ptr.vmem [resolvable:$true] %s327
          %333 = dma.hbm_to_vmem [thread:$0]  %s326, 512, %s328, %s316, 128, 128, 8
        $region52: #{tpu_custom_call.1} parent=47 // pred_fallthru
          _
      $region48: #{tpu_custom_call.1} parent=5 // pred_fallthru
        _
      %p334 = scmp.le.s32.totalorder 1, %s20
      %p335 = scmp.lt.s32.totalorder %s20, 3
      %p336 = pnand %p334, %p335
      %p337 = pneg %p336
      // Predicated region
      $region53: #{tpu_custom_call.1} parent=5 // pred_check
        _
      $region54: #{tpu_custom_call.1} parent=5 // pred_check_branch
        %339 = sbr.rel (%p336) target = $region56
      $region55: #{tpu_custom_call.1} parent=5 // pred_region
        %s340 = ssub.s32 %s20, 1
        // Predicated region
        $region57: #{tpu_custom_call.1} parent=55 // pred_check
          %p341 = pneg %p41
        $region58: #{tpu_custom_call.1} parent=55 // pred_check_branch
          %343 = sbr.rel (%p341) target = $region60
        $region59: #{tpu_custom_call.1} parent=55 // pred_region
          %345 = dma.done [#allocation3], 32
        $region60: #{tpu_custom_call.1} parent=55 // pred_fallthru
          _
        %s346 = sand.u32 %s25, 1
        %s347 = scalar_lea.sflag [#allocation5], %s346
        %s348 = sand.u32 %s54, 1
        %s349 = smul.addr %s348, 32
        %s350 = scalar_lea.vmem [#allocation4], %s349
        // Predicated region
        $region61: #{tpu_custom_call.1} parent=55 // pred_check
          %p351 = pneg %p67
        $region62: #{tpu_custom_call.1} parent=55 // pred_check_branch
          %353 = sbr.rel (%p351) target = $region64
        $region63: #{tpu_custom_call.1} parent=55 // pred_region
          %355 = dma.done %s347, 512
        $region64: #{tpu_custom_call.1} parent=55 // pred_fallthru
          _
        // Predicated region
        $region65: #{tpu_custom_call.1} parent=55 // pred_check
          %p356 = pneg %p109
        $region66: #{tpu_custom_call.1} parent=55 // pred_check_branch
          %358 = sbr.rel (%p356) target = $region68
        $region67: #{tpu_custom_call.1} parent=55 // pred_region
          %360 = dma.done [#allocation5], 32
        $region68: #{tpu_custom_call.1} parent=55 // pred_fallthru
          _
        // Predicated region
        $region69: #{tpu_custom_call.1} parent=55 // pred_check
          %p361 = pneg %p130
        $region70: #{tpu_custom_call.1} parent=55 // pred_check_branch
          %363 = sbr.rel (%p361) target = $region72
        $region71: #{tpu_custom_call.1} parent=55 // pred_region
          %365 = dma.done [#allocation8], 4096
        $region72: #{tpu_custom_call.1} parent=55 // pred_fallthru
          _
        %p366 = pneg %p41
        %p367 = pneg %p38
        %s368 = sand.u32 %s25, 1
        %s369 = scalar_lea.sflag [#allocation5], %s368
        %s370 = sand.u32 %s54, 1
        %s371 = smul.addr %s370, 32
        %s372 = scalar_lea.vmem [#allocation4], %s371
        %p373 = pneg %p67
        %p374 = pneg %p64
        %p375 = pneg %p88
        %p376 = pneg %p85
        %p377 = pneg %p109
        %p378 = pneg %p106
        %p379 = pneg %p130
        %p380 = pneg %p127
        %p381 = pneg %p151
        %p382 = pneg %p148
        %p383 = pneg %p172
        %p384 = pneg %p169
        %p385 = pneg %p193
        %p386 = pneg %p190
        %p387 = pneg %p214
        %p388 = pneg %p211
        %p389 = pneg %p240
        %p390 = pneg %p237
        %s391 = smul.u32 4, %s25
        %p392 = scmp.lt.s32.totalorder %s391, 7
        %s393 = scalar_select %p392, %s391, 7
        %s394 = smul.addr %s393, 8
        %s395 = scalar_lea.vmem %s9, %s394
        %s396 = smul.u32 4, %s25
        %s397 = smul.u32 4, %s25
        %p398 = scmp.lt.s32.totalorder %s397, 7
        %s399 = scalar_select %p398, %s397, 7
        %s400 = smul.addr %s399, 8
        %s401 = scalar_lea.vmem %s9, %s400
        %s402 = smul.u32 4, %s25
        %v403 = vld [vmem:[%s350] sm:$0xff]
        %v404 = vld [vmem:[%s350 + $0x8] sm:$0xff]
        %v405 = vld [vmem:[%s350 + $0x10] sm:$0xff]
        %v406 = vld [vmem:[%s350 + $0x18] sm:$0xff]
        %v407 = vld [vmem:[#allocation2] sm:$0x3]
        %v408 = vperm.slane %v407, 0
        %v409 = vsub.f32 %v403, %v408
        %v410 = vsub.f32 %v404, %v408
        %v411 = vsub.f32 %v405, %v408
        %v412 = vsub.f32 %v406, %v408
        %v413 = vperm.slane %v407, 1
        %v414 = vmul.f32 %v409, %v413
        %v415 = vmul.f32 %v410, %v413
        %v416 = vmul.f32 %v411, %v413
        %v417 = vmul.f32 %v412, %v413
        %v418 = vceil.f32 %v414
        %v419 = vceil.f32 %v415
        %v420 = vceil.f32 %v416
        %v421 = vceil.f32 %v417
        %v422 = vsub.f32 %v418, 1.0
        %v423 = vsub.f32 %v419, 1.0
        %v424 = vsub.f32 %v420, 1.0
        %v425 = vsub.f32 %v421, 1.0
        %v426 = vmax.f32 %v422, 0.0
        %v427 = vmax.f32 %v423, 0.0
        %v428 = vmax.f32 %v424, 0.0
        %v429 = vmax.f32 %v425, 0.0
        %v430 = vmin.f32 %v426, 24.0
        %v431 = vmin.f32 %v427, 24.0
        %v432 = vmin.f32 %v428, 24.0
        %v433 = vmin.f32 %v429, 24.0
        %v434 = vpack.c.bf16 %v431, %v430
        %v435 = vpack.c.bf16 %v433, %v432
        %v436 = vld [vmem:[%s2] sm:$0xff]
        %v437 = vld [vmem:[%s2 + $0x8] sm:$0xff]
        %v438 = vld [vmem:[%s2 + $0x10] sm:$0xff]
        %v439 = vld [vmem:[%s2 + $0x18] sm:$0xff]
        %v440 = vld [vmem:[%s2 + $0x20] sm:$0xff]
        %v441 = vld [vmem:[%s2 + $0x28] sm:$0xff]
        %v442 = vld [vmem:[%s2 + $0x30] sm:$0xff]
        %v443 = vld [vmem:[%s2 + $0x38] sm:$0xff]
        %v444 = vld [vmem:[%s2 + $0x40] sm:$0xff]
        %v445 = vld [vmem:[%s2 + $0x48] sm:$0xff]
        %v446 = vld [vmem:[%s2 + $0x50] sm:$0xff]
        %v447 = vld [vmem:[%s2 + $0x58] sm:$0xff]
        %v448 = vld [vmem:[%s2 + $0x60] sm:$0xff]
        %v449 = vld [vmem:[%s2 + $0x68] sm:$0xff]
        %v450 = vld [vmem:[%s2 + $0x70] sm:$0xff]
        %v451 = vld [vmem:[%s2 + $0x78] sm:$0xff]
        %v452 = vld [vmem:[#allocation6] sm:$0x3]
        %v454 = vperm.slane %v452, 0
        %v455 = vperm.slane %v452, 1
        %v474 = vunpack.c.l.b16 %v436
        %v475 = vunpack.c.h.b16 %v436
        %v476 = vunpack.c.l.b16 %v437
        %v477 = vunpack.c.h.b16 %v437
        %v478 = vunpack.c.l.b16 %v438
        %v479 = vunpack.c.h.b16 %v438
        %v480 = vunpack.c.l.b16 %v439
        %v481 = vunpack.c.h.b16 %v439
        %v482 = vunpack.c.l.b16 %v440
        %v483 = vunpack.c.h.b16 %v440
        %v484 = vunpack.c.l.b16 %v441
        %v485 = vunpack.c.h.b16 %v441
        %v486 = vunpack.c.l.b16 %v442
        %v487 = vunpack.c.h.b16 %v442
        %v488 = vunpack.c.l.b16 %v443
        %v489 = vunpack.c.h.b16 %v443
        %v490 = vunpack.c.l.b16 %v444
        %v491 = vunpack.c.h.b16 %v444
        %v492 = vunpack.c.l.b16 %v445
        %v493 = vunpack.c.h.b16 %v445
        %v494 = vunpack.c.l.b16 %v446
        %v495 = vunpack.c.h.b16 %v446
        %v496 = vunpack.c.l.b16 %v447
        %v497 = vunpack.c.h.b16 %v447
        %v498 = vunpack.c.l.b16 %v448
        %v499 = vunpack.c.h.b16 %v448
        %v500 = vunpack.c.l.b16 %v449
        %v501 = vunpack.c.h.b16 %v449
        %v502 = vunpack.c.l.b16 %v450
        %v503 = vunpack.c.h.b16 %v450
        %v504 = vunpack.c.l.b16 %v451
        %v505 = vunpack.c.h.b16 %v451
        %v506 = vpack.c.b16 %v476, %v474
        %v507 = vpack.c.b16 %v477, %v475
        %v508 = vpack.c.b16 %v480, %v478
        %v509 = vpack.c.b16 %v481, %v479
        %v510 = vpack.c.b16 %v484, %v482
        %v511 = vpack.c.b16 %v485, %v483
        %v512 = vpack.c.b16 %v488, %v486
        %v513 = vpack.c.b16 %v489, %v487
        %v514 = vpack.c.b16 %v492, %v490
        %v515 = vpack.c.b16 %v493, %v491
        %v516 = vpack.c.b16 %v496, %v494
        %v517 = vpack.c.b16 %v497, %v495
        %v518 = vpack.c.b16 %v500, %v498
        %v519 = vpack.c.b16 %v501, %v499
        %v520 = vpack.c.b16 %v504, %v502
        %v521 = vpack.c.b16 %v505, %v503
        %538 = vmatpush.bf16.msra.mxu0 %v520
        %539 = vmatpush.bf16.msra.mxu0 %v518
        %540 = vmatpush.bf16.msra.mxu0 %v516
        %541 = vmatpush.bf16.msra.mxu0 %v514
        %542 = vmatpush.bf16.msra.mxu0 %v512
        %543 = vmatpush.bf16.msra.mxu0 %v510
        %544 = vmatpush.bf16.msra.mxu0 %v508
        %545 = vmatpush.bf16.msra.mxu0 %v506
        %546 = vmatmul.bf16.gmra.mxu0 %v434
        %v547 = vpop.f32.mrf.mxu0
        %v548 = vadd.f32 %v454, %v547
        %v549 = vpop.f32.mrf.mxu0
        %v550 = vadd.f32 %v454, %v549
        %551 = vmatmul.bf16.gmra.mxu0 %v435
        %v552 = vpop.f32.mrf.mxu0
        %v553 = vadd.f32 %v454, %v552
        %v554 = vpop.f32.mrf.mxu0
        %v555 = vadd.f32 %v454, %v554
        %556 = vdwg.mxu0
        %557 = vmatpush.bf16.msra.mxu0 %v521
        %558 = vmatpush.bf16.msra.mxu0 %v519
        %559 = vmatpush.bf16.msra.mxu0 %v517
        %560 = vmatpush.bf16.msra.mxu0 %v515
        %561 = vmatpush.bf16.msra.mxu0 %v513
        %562 = vmatpush.bf16.msra.mxu0 %v511
        %563 = vmatpush.bf16.msra.mxu0 %v509
        %564 = vmatpush.bf16.msra.mxu0 %v507
        %565 = vmatmul.bf16.gmra.mxu0 %v434
        %v566 = vpop.f32.mrf.mxu0
        %v567 = vadd.f32 %v455, %v566
        %v568 = vpop.f32.mrf.mxu0
        %v569 = vadd.f32 %v455, %v568
        %570 = vmatmul.bf16.gmra.mxu0 %v435
        %v571 = vpop.f32.mrf.mxu0
        %v572 = vadd.f32 %v455, %v571
        %v573 = vpop.f32.mrf.mxu0
        %v574 = vadd.f32 %v455, %v573
        %575 = vdwg.mxu0
        %v576 = vmax.f32 %v548, 0.0
        %v577 = vmax.f32 %v567, 0.0
        %v578 = vmax.f32 %v550, 0.0
        %v579 = vmax.f32 %v569, 0.0
        %v580 = vmax.f32 %v553, 0.0
        %v581 = vmax.f32 %v572, 0.0
        %v582 = vmax.f32 %v555, 0.0
        %v583 = vmax.f32 %v574, 0.0
        %v584 = vld [vmem:[#allocation7] sm:$0xff]
        %v585 = vld [vmem:[#allocation7 + $0x8] sm:$0xff]
        %v586 = vld [vmem:[#allocation7 + $0x10] sm:$0xff]
        %v587 = vld [vmem:[#allocation7 + $0x18] sm:$0xff]
        %v588 = vld [vmem:[#allocation7 + $0x20] sm:$0xff]
        %v589 = vld [vmem:[#allocation7 + $0x28] sm:$0xff]
        %v590 = vld [vmem:[#allocation7 + $0x30] sm:$0xff]
        %v591 = vld [vmem:[#allocation7 + $0x38] sm:$0xff]
        %v592 = vld [vmem:[#allocation7 + $0x40] sm:$0xff]
        %v593 = vld [vmem:[#allocation7 + $0x48] sm:$0xff]
        %v594 = vld [vmem:[#allocation7 + $0x50] sm:$0xff]
        %v595 = vld [vmem:[#allocation7 + $0x58] sm:$0xff]
        %v596 = vld [vmem:[#allocation7 + $0x60] sm:$0xff]
        %v597 = vld [vmem:[#allocation7 + $0x68] sm:$0xff]
        %v598 = vld [vmem:[#allocation7 + $0x70] sm:$0xff]
        %v599 = vld [vmem:[#allocation7 + $0x78] sm:$0xff]
        %v600 = vld [vmem:[#allocation7 + $0x80] sm:$0xff]
        %v601 = vld [vmem:[#allocation7 + $0x88] sm:$0xff]
        %v602 = vld [vmem:[#allocation7 + $0x90] sm:$0xff]
        %v603 = vld [vmem:[#allocation7 + $0x98] sm:$0xff]
        %v604 = vld [vmem:[#allocation7 + $0xa0] sm:$0xff]
        %v605 = vld [vmem:[#allocation7 + $0xa8] sm:$0xff]
        %v606 = vld [vmem:[#allocation7 + $0xb0] sm:$0xff]
        %v607 = vld [vmem:[#allocation7 + $0xb8] sm:$0xff]
        %v608 = vld [vmem:[#allocation7 + $0xc0] sm:$0xff]
        %v609 = vld [vmem:[#allocation7 + $0xc8] sm:$0xff]
        %v610 = vld [vmem:[#allocation7 + $0xd0] sm:$0xff]
        %v611 = vld [vmem:[#allocation7 + $0xd8] sm:$0xff]
        %v612 = vld [vmem:[#allocation7 + $0xe0] sm:$0xff]
        %v613 = vld [vmem:[#allocation7 + $0xe8] sm:$0xff]
        %v614 = vld [vmem:[#allocation7 + $0xf0] sm:$0xff]
        %v615 = vld [vmem:[#allocation7 + $0xf8] sm:$0xff]
        %v616 = vld [vmem:[%s5] sm:$0x3]
        %v618 = vperm.slane %v616, 0
        %v619 = vperm.slane %v616, 1
        %v622 = vpack.c.bf16 %v578, %v576
        %v623 = vpack.c.bf16 %v579, %v577
        %v624 = vpack.c.bf16 %v582, %v580
        %v625 = vpack.c.bf16 %v583, %v581
        %v658 = vunpack.c.l.b16 %v584
        %v659 = vunpack.c.h.b16 %v584
        %v660 = vunpack.c.l.b16 %v585
        %v661 = vunpack.c.h.b16 %v585
        %v662 = vunpack.c.l.b16 %v586
        %v663 = vunpack.c.h.b16 %v586
        %v664 = vunpack.c.l.b16 %v587
        %v665 = vunpack.c.h.b16 %v587
        %v666 = vunpack.c.l.b16 %v588
        %v667 = vunpack.c.h.b16 %v588
        %v668 = vunpack.c.l.b16 %v589
        %v669 = vunpack.c.h.b16 %v589
        %v670 = vunpack.c.l.b16 %v590
        %v671 = vunpack.c.h.b16 %v590
        %v672 = vunpack.c.l.b16 %v591
        %v673 = vunpack.c.h.b16 %v591
        %v674 = vunpack.c.l.b16 %v592
        %v675 = vunpack.c.h.b16 %v592
        %v676 = vunpack.c.l.b16 %v593
        %v677 = vunpack.c.h.b16 %v593
        %v678 = vunpack.c.l.b16 %v594
        %v679 = vunpack.c.h.b16 %v594
        %v680 = vunpack.c.l.b16 %v595
        %v681 = vunpack.c.h.b16 %v595
        %v682 = vunpack.c.l.b16 %v596
        %v683 = vunpack.c.h.b16 %v596
        %v684 = vunpack.c.l.b16 %v597
        %v685 = vunpack.c.h.b16 %v597
        %v686 = vunpack.c.l.b16 %v598
        %v687 = vunpack.c.h.b16 %v598
        %v688 = vunpack.c.l.b16 %v599
        %v689 = vunpack.c.h.b16 %v599
        %v690 = vunpack.c.l.b16 %v600
        %v691 = vunpack.c.h.b16 %v600
        %v692 = vunpack.c.l.b16 %v601
        %v693 = vunpack.c.h.b16 %v601
        %v694 = vunpack.c.l.b16 %v602
        %v695 = vunpack.c.h.b16 %v602
        %v696 = vunpack.c.l.b16 %v603
        %v697 = vunpack.c.h.b16 %v603
        %v698 = vunpack.c.l.b16 %v604
        %v699 = vunpack.c.h.b16 %v604
        %v700 = vunpack.c.l.b16 %v605
        %v701 = vunpack.c.h.b16 %v605
        %v702 = vunpack.c.l.b16 %v606
        %v703 = vunpack.c.h.b16 %v606
        %v704 = vunpack.c.l.b16 %v607
        %v705 = vunpack.c.h.b16 %v607
        %v706 = vunpack.c.l.b16 %v608
        %v707 = vunpack.c.h.b16 %v608
        %v708 = vunpack.c.l.b16 %v609
        %v709 = vunpack.c.h.b16 %v609
        %v710 = vunpack.c.l.b16 %v610
        %v711 = vunpack.c.h.b16 %v610
        %v712 = vunpack.c.l.b16 %v611
        %v713 = vunpack.c.h.b16 %v611
        %v714 = vunpack.c.l.b16 %v612
        %v715 = vunpack.c.h.b16 %v612
        %v716 = vunpack.c.l.b16 %v613
        %v717 = vunpack.c.h.b16 %v613
        %v718 = vunpack.c.l.b16 %v614
        %v719 = vunpack.c.h.b16 %v614
        %v720 = vunpack.c.l.b16 %v615
        %v721 = vunpack.c.h.b16 %v615
        %v722 = vpack.c.b16 %v660, %v658
        %v723 = vpack.c.b16 %v661, %v659
        %v724 = vpack.c.b16 %v664, %v662
        %v725 = vpack.c.b16 %v665, %v663
        %v726 = vpack.c.b16 %v668, %v666
        %v727 = vpack.c.b16 %v669, %v667
        %v728 = vpack.c.b16 %v672, %v670
        %v729 = vpack.c.b16 %v673, %v671
        %v730 = vpack.c.b16 %v676, %v674
        %v731 = vpack.c.b16 %v677, %v675
        %v732 = vpack.c.b16 %v680, %v678
        %v733 = vpack.c.b16 %v681, %v679
        %v734 = vpack.c.b16 %v684, %v682
        %v735 = vpack.c.b16 %v685, %v683
        %v736 = vpack.c.b16 %v688, %v686
        %v737 = vpack.c.b16 %v689, %v687
        %v738 = vpack.c.b16 %v692, %v690
        %v739 = vpack.c.b16 %v693, %v691
        %v740 = vpack.c.b16 %v696, %v694
        %v741 = vpack.c.b16 %v697, %v695
        %v742 = vpack.c.b16 %v700, %v698
        %v743 = vpack.c.b16 %v701, %v699
        %v744 = vpack.c.b16 %v704, %v702
        %v745 = vpack.c.b16 %v705, %v703
        %v746 = vpack.c.b16 %v708, %v706
        %v747 = vpack.c.b16 %v709, %v707
        %v748 = vpack.c.b16 %v712, %v710
        %v749 = vpack.c.b16 %v713, %v711
        %v750 = vpack.c.b16 %v716, %v714
        %v751 = vpack.c.b16 %v717, %v715
        %v752 = vpack.c.b16 %v720, %v718
        %v753 = vpack.c.b16 %v721, %v719
        %786 = vmatpush.bf16.msra.mxu0 %v736
        %787 = vmatpush.bf16.msra.mxu0 %v734
        %788 = vmatpush.bf16.msra.mxu0 %v732
        %789 = vmatpush.bf16.msra.mxu0 %v730
        %790 = vmatpush.bf16.msra.mxu0 %v728
        %791 = vmatpush.bf16.msra.mxu0 %v726
        %792 = vmatpush.bf16.msra.mxu0 %v724
        %793 = vmatpush.bf16.msra.mxu0 %v722
        %794 = vmatmul.bf16.gmra.mxu0 %v622
        %v795 = vpop.f32.mrf.mxu0
        %v796 = vadd.f32 %v618, %v795
        %v797 = vpop.f32.mrf.mxu0
        %v798 = vadd.f32 %v618, %v797
        %799 = vmatmul.bf16.gmra.mxu0 %v624
        %v800 = vpop.f32.mrf.mxu0
        %v801 = vadd.f32 %v618, %v800
        %v802 = vpop.f32.mrf.mxu0
        %v803 = vadd.f32 %v618, %v802
        %804 = vdwg.mxu0
        %805 = vmatpush.bf16.msra.mxu0 %v752
        %806 = vmatpush.bf16.msra.mxu0 %v750
        %807 = vmatpush.bf16.msra.mxu0 %v748
        %808 = vmatpush.bf16.msra.mxu0 %v746
        %809 = vmatpush.bf16.msra.mxu0 %v744
        %810 = vmatpush.bf16.msra.mxu0 %v742
        %811 = vmatpush.bf16.msra.mxu0 %v740
        %812 = vmatpush.bf16.msra.mxu0 %v738
        %813 = vmatmul.bf16.gmra.mxu0 %v623
        %v814 = vpop.f32.mrf.mxu0
        %v815 = vadd.f32 %v796, %v814
        %v816 = vpop.f32.mrf.mxu0
        %v817 = vadd.f32 %v798, %v816
        %818 = vmatmul.bf16.gmra.mxu0 %v625
        %v819 = vpop.f32.mrf.mxu0
        %v820 = vadd.f32 %v801, %v819
        %v821 = vpop.f32.mrf.mxu0
        %v822 = vadd.f32 %v803, %v821
        %823 = vdwg.mxu0
        %824 = vmatpush.bf16.msra.mxu0 %v737
        %825 = vmatpush.bf16.msra.mxu0 %v735
        %826 = vmatpush.bf16.msra.mxu0 %v733
        %827 = vmatpush.bf16.msra.mxu0 %v731
        %828 = vmatpush.bf16.msra.mxu0 %v729
        %829 = vmatpush.bf16.msra.mxu0 %v727
        %830 = vmatpush.bf16.msra.mxu0 %v725
        %831 = vmatpush.bf16.msra.mxu0 %v723
        %832 = vmatmul.bf16.gmra.mxu0 %v622
        %v833 = vpop.f32.mrf.mxu0
        %v834 = vadd.f32 %v619, %v833
        %v835 = vpop.f32.mrf.mxu0
        %v836 = vadd.f32 %v619, %v835
        %837 = vmatmul.bf16.gmra.mxu0 %v624
        %v838 = vpop.f32.mrf.mxu0
        %v839 = vadd.f32 %v619, %v838
        %v840 = vpop.f32.mrf.mxu0
        %v841 = vadd.f32 %v619, %v840
        %842 = vdwg.mxu0
        %843 = vmatpush.bf16.msra.mxu0 %v753
        %844 = vmatpush.bf16.msra.mxu0 %v751
        %845 = vmatpush.bf16.msra.mxu0 %v749
        %846 = vmatpush.bf16.msra.mxu0 %v747
        %847 = vmatpush.bf16.msra.mxu0 %v745
        %848 = vmatpush.bf16.msra.mxu0 %v743
        %849 = vmatpush.bf16.msra.mxu0 %v741
        %850 = vmatpush.bf16.msra.mxu0 %v739
        %851 = vmatmul.bf16.gmra.mxu0 %v623
        %v852 = vpop.f32.mrf.mxu0
        %v853 = vadd.f32 %v834, %v852
        %v854 = vpop.f32.mrf.mxu0
        %v855 = vadd.f32 %v836, %v854
        %856 = vmatmul.bf16.gmra.mxu0 %v625
        %v857 = vpop.f32.mrf.mxu0
        %v858 = vadd.f32 %v839, %v857
        %v859 = vpop.f32.mrf.mxu0
        %v860 = vadd.f32 %v841, %v859
        %861 = vdwg.mxu0
        %v862 = vmax.f32 %v815, 0.0
        %v863 = vmax.f32 %v853, 0.0
        %v864 = vmax.f32 %v817, 0.0
        %v865 = vmax.f32 %v855, 0.0
        %v866 = vmax.f32 %v820, 0.0
        %v867 = vmax.f32 %v858, 0.0
        %v868 = vmax.f32 %v822, 0.0
        %v869 = vmax.f32 %v860, 0.0
        %v870 = vpack.c.bf16 %v864, %v862
        %v871 = vpack.c.bf16 %v865, %v863
        %v872 = vpack.c.bf16 %v868, %v866
        %v873 = vpack.c.bf16 %v869, %v867
        %874 = vmatpush.bf16.msra.mxu0 %v736
        %875 = vmatpush.bf16.msra.mxu0 %v734
        %876 = vmatpush.bf16.msra.mxu0 %v732
        %877 = vmatpush.bf16.msra.mxu0 %v730
        %878 = vmatpush.bf16.msra.mxu0 %v728
        %879 = vmatpush.bf16.msra.mxu0 %v726
        %880 = vmatpush.bf16.msra.mxu0 %v724
        %881 = vmatpush.bf16.msra.mxu0 %v722
        %882 = vmatmul.bf16.gmra.mxu0 %v870
        %v883 = vpop.f32.mrf.mxu0
        %v884 = vadd.f32 %v618, %v883
        %v885 = vpop.f32.mrf.mxu0
        %v886 = vadd.f32 %v618, %v885
        %887 = vmatmul.bf16.gmra.mxu0 %v872
        %v888 = vpop.f32.mrf.mxu0
        %v889 = vadd.f32 %v618, %v888
        %v890 = vpop.f32.mrf.mxu0
        %v891 = vadd.f32 %v618, %v890
        %892 = vdwg.mxu0
        %893 = vmatpush.bf16.msra.mxu0 %v752
        %894 = vmatpush.bf16.msra.mxu0 %v750
        %895 = vmatpush.bf16.msra.mxu0 %v748
        %896 = vmatpush.bf16.msra.mxu0 %v746
        %897 = vmatpush.bf16.msra.mxu0 %v744
        %898 = vmatpush.bf16.msra.mxu0 %v742
        %899 = vmatpush.bf16.msra.mxu0 %v740
        %900 = vmatpush.bf16.msra.mxu0 %v738
        %901 = vmatmul.bf16.gmra.mxu0 %v871
        %v902 = vpop.f32.mrf.mxu0
        %v903 = vadd.f32 %v884, %v902
        %v904 = vpop.f32.mrf.mxu0
        %v905 = vadd.f32 %v886, %v904
        %906 = vmatmul.bf16.gmra.mxu0 %v873
        %v907 = vpop.f32.mrf.mxu0
        %v908 = vadd.f32 %v889, %v907
        %v909 = vpop.f32.mrf.mxu0
        %v910 = vadd.f32 %v891, %v909
        %911 = vdwg.mxu0
        %912 = vmatpush.bf16.msra.mxu0 %v737
        %913 = vmatpush.bf16.msra.mxu0 %v735
        %914 = vmatpush.bf16.msra.mxu0 %v733
        %915 = vmatpush.bf16.msra.mxu0 %v731
        %916 = vmatpush.bf16.msra.mxu0 %v729
        %917 = vmatpush.bf16.msra.mxu0 %v727
        %918 = vmatpush.bf16.msra.mxu0 %v725
        %919 = vmatpush.bf16.msra.mxu0 %v723
        %920 = vmatmul.bf16.gmra.mxu0 %v870
        %v921 = vpop.f32.mrf.mxu0
        %v922 = vadd.f32 %v619, %v921
        %v923 = vpop.f32.mrf.mxu0
        %v924 = vadd.f32 %v619, %v923
        %925 = vmatmul.bf16.gmra.mxu0 %v872
        %v926 = vpop.f32.mrf.mxu0
        %v927 = vadd.f32 %v619, %v926
        %v928 = vpop.f32.mrf.mxu0
        %v929 = vadd.f32 %v619, %v928
        %930 = vdwg.mxu0
        %931 = vmatpush.bf16.msra.mxu0 %v753
        %932 = vmatpush.bf16.msra.mxu0 %v751
        %933 = vmatpush.bf16.msra.mxu0 %v749
        %934 = vmatpush.bf16.msra.mxu0 %v747
        %935 = vmatpush.bf16.msra.mxu0 %v745
        %936 = vmatpush.bf16.msra.mxu0 %v743
        %937 = vmatpush.bf16.msra.mxu0 %v741
        %938 = vmatpush.bf16.msra.mxu0 %v739
        %939 = vmatmul.bf16.gmra.mxu0 %v871
        %v940 = vpop.f32.mrf.mxu0
        %v941 = vadd.f32 %v922, %v940
        %v942 = vpop.f32.mrf.mxu0
        %v943 = vadd.f32 %v924, %v942
        %944 = vmatmul.bf16.gmra.mxu0 %v873
        %v945 = vpop.f32.mrf.mxu0
        %v946 = vadd.f32 %v927, %v945
        %v947 = vpop.f32.mrf.mxu0
        %v948 = vadd.f32 %v929, %v947
        %949 = vdwg.mxu0
        %v950 = vmax.f32 %v903, 0.0
        %v951 = vmax.f32 %v941, 0.0
        %v952 = vmax.f32 %v905, 0.0
        %v953 = vmax.f32 %v943, 0.0
        %v954 = vmax.f32 %v908, 0.0
        %v955 = vmax.f32 %v946, 0.0
        %v956 = vmax.f32 %v910, 0.0
        %v957 = vmax.f32 %v948, 0.0
        %v958 = vpack.c.bf16 %v952, %v950
        %v959 = vpack.c.bf16 %v953, %v951
        %v960 = vpack.c.bf16 %v956, %v954
        %v961 = vpack.c.bf16 %v957, %v955
        %962 = vmatpush.bf16.msra.mxu0 %v736
        %963 = vmatpush.bf16.msra.mxu0 %v734
        %964 = vmatpush.bf16.msra.mxu0 %v732
        %965 = vmatpush.bf16.msra.mxu0 %v730
        %966 = vmatpush.bf16.msra.mxu0 %v728
        %967 = vmatpush.bf16.msra.mxu0 %v726
        %968 = vmatpush.bf16.msra.mxu0 %v724
        %969 = vmatpush.bf16.msra.mxu0 %v722
        %970 = vmatmul.bf16.gmra.mxu0 %v958
        %v971 = vpop.f32.mrf.mxu0
        %v972 = vadd.f32 %v618, %v971
        %v973 = vpop.f32.mrf.mxu0
        %v974 = vadd.f32 %v618, %v973
        %975 = vmatmul.bf16.gmra.mxu0 %v960
        %v976 = vpop.f32.mrf.mxu0
        %v977 = vadd.f32 %v618, %v976
        %v978 = vpop.f32.mrf.mxu0
        %v979 = vadd.f32 %v618, %v978
        %980 = vdwg.mxu0
        %981 = vmatpush.bf16.msra.mxu0 %v752
        %982 = vmatpush.bf16.msra.mxu0 %v750
        %983 = vmatpush.bf16.msra.mxu0 %v748
        %984 = vmatpush.bf16.msra.mxu0 %v746
        %985 = vmatpush.bf16.msra.mxu0 %v744
        %986 = vmatpush.bf16.msra.mxu0 %v742
        %987 = vmatpush.bf16.msra.mxu0 %v740
        %988 = vmatpush.bf16.msra.mxu0 %v738
        %989 = vmatmul.bf16.gmra.mxu0 %v959
        %v990 = vpop.f32.mrf.mxu0
        %v991 = vadd.f32 %v972, %v990
        %v992 = vpop.f32.mrf.mxu0
        %v993 = vadd.f32 %v974, %v992
        %994 = vmatmul.bf16.gmra.mxu0 %v961
        %v995 = vpop.f32.mrf.mxu0
        %v996 = vadd.f32 %v977, %v995
        %v997 = vpop.f32.mrf.mxu0
        %v998 = vadd.f32 %v979, %v997
        %999 = vdwg.mxu0
        %1000 = vmatpush.bf16.msra.mxu0 %v737
        %1001 = vmatpush.bf16.msra.mxu0 %v735
        %1002 = vmatpush.bf16.msra.mxu0 %v733
        %1003 = vmatpush.bf16.msra.mxu0 %v731
        %1004 = vmatpush.bf16.msra.mxu0 %v729
        %1005 = vmatpush.bf16.msra.mxu0 %v727
        %1006 = vmatpush.bf16.msra.mxu0 %v725
        %1007 = vmatpush.bf16.msra.mxu0 %v723
        %1008 = vmatmul.bf16.gmra.mxu0 %v958
        %v1009 = vpop.f32.mrf.mxu0
        %v1010 = vadd.f32 %v619, %v1009
        %v1011 = vpop.f32.mrf.mxu0
        %v1012 = vadd.f32 %v619, %v1011
        %1013 = vmatmul.bf16.gmra.mxu0 %v960
        %v1014 = vpop.f32.mrf.mxu0
        %v1015 = vadd.f32 %v619, %v1014
        %v1016 = vpop.f32.mrf.mxu0
        %v1017 = vadd.f32 %v619, %v1016
        %1018 = vdwg.mxu0
        %1019 = vmatpush.bf16.msra.mxu0 %v753
        %1020 = vmatpush.bf16.msra.mxu0 %v751
        %1021 = vmatpush.bf16.msra.mxu0 %v749
        %1022 = vmatpush.bf16.msra.mxu0 %v747
        %1023 = vmatpush.bf16.msra.mxu0 %v745
        %1024 = vmatpush.bf16.msra.mxu0 %v743
        %1025 = vmatpush.bf16.msra.mxu0 %v741
        %1026 = vmatpush.bf16.msra.mxu0 %v739
        %1027 = vmatmul.bf16.gmra.mxu0 %v959
        %v1028 = vpop.f32.mrf.mxu0
        %v1029 = vadd.f32 %v1010, %v1028
        %v1030 = vpop.f32.mrf.mxu0
        %v1031 = vadd.f32 %v1012, %v1030
        %1032 = vmatmul.bf16.gmra.mxu0 %v961
        %v1033 = vpop.f32.mrf.mxu0
        %v1034 = vadd.f32 %v1015, %v1033
        %v1035 = vpop.f32.mrf.mxu0
        %v1036 = vadd.f32 %v1017, %v1035
        %1037 = vdwg.mxu0
        %v1038 = vmax.f32 %v991, 0.0
        %v1039 = vmax.f32 %v1029, 0.0
        %v1040 = vmax.f32 %v993, 0.0
        %v1041 = vmax.f32 %v1031, 0.0
        %v1042 = vmax.f32 %v996, 0.0
        %v1043 = vmax.f32 %v1034, 0.0
        %v1044 = vmax.f32 %v998, 0.0
        %v1045 = vmax.f32 %v1036, 0.0
        %v1046 = vpack.c.bf16 %v1040, %v1038
        %v1047 = vpack.c.bf16 %v1041, %v1039
        %v1048 = vpack.c.bf16 %v1044, %v1042
        %v1049 = vpack.c.bf16 %v1045, %v1043
        %1050 = vmatpush.bf16.msra.mxu0 %v736
        %1051 = vmatpush.bf16.msra.mxu0 %v734
        %1052 = vmatpush.bf16.msra.mxu0 %v732
        %1053 = vmatpush.bf16.msra.mxu0 %v730
        %1054 = vmatpush.bf16.msra.mxu0 %v728
        %1055 = vmatpush.bf16.msra.mxu0 %v726
        %1056 = vmatpush.bf16.msra.mxu0 %v724
        %1057 = vmatpush.bf16.msra.mxu0 %v722
        %1058 = vmatmul.bf16.gmra.mxu0 %v1046
        %v1059 = vpop.f32.mrf.mxu0
        %v1060 = vadd.f32 %v618, %v1059
        %v1061 = vpop.f32.mrf.mxu0
        %v1062 = vadd.f32 %v618, %v1061
        %1063 = vmatmul.bf16.gmra.mxu0 %v1048
        %v1064 = vpop.f32.mrf.mxu0
        %v1065 = vadd.f32 %v618, %v1064
        %v1066 = vpop.f32.mrf.mxu0
        %v1067 = vadd.f32 %v618, %v1066
        %1068 = vdwg.mxu0
        %1069 = vmatpush.bf16.msra.mxu0 %v752
        %1070 = vmatpush.bf16.msra.mxu0 %v750
        %1071 = vmatpush.bf16.msra.mxu0 %v748
        %1072 = vmatpush.bf16.msra.mxu0 %v746
        %1073 = vmatpush.bf16.msra.mxu0 %v744
        %1074 = vmatpush.bf16.msra.mxu0 %v742
        %1075 = vmatpush.bf16.msra.mxu0 %v740
        %1076 = vmatpush.bf16.msra.mxu0 %v738
        %1077 = vmatmul.bf16.gmra.mxu0 %v1047
        %v1078 = vpop.f32.mrf.mxu0
        %v1079 = vadd.f32 %v1060, %v1078
        %v1080 = vpop.f32.mrf.mxu0
        %v1081 = vadd.f32 %v1062, %v1080
        %1082 = vmatmul.bf16.gmra.mxu0 %v1049
        %v1083 = vpop.f32.mrf.mxu0
        %v1084 = vadd.f32 %v1065, %v1083
        %v1085 = vpop.f32.mrf.mxu0
        %v1086 = vadd.f32 %v1067, %v1085
        %1087 = vdwg.mxu0
        %1088 = vmatpush.bf16.msra.mxu0 %v737
        %1089 = vmatpush.bf16.msra.mxu0 %v735
        %1090 = vmatpush.bf16.msra.mxu0 %v733
        %1091 = vmatpush.bf16.msra.mxu0 %v731
        %1092 = vmatpush.bf16.msra.mxu0 %v729
        %1093 = vmatpush.bf16.msra.mxu0 %v727
        %1094 = vmatpush.bf16.msra.mxu0 %v725
        %1095 = vmatpush.bf16.msra.mxu0 %v723
        %1096 = vmatmul.bf16.gmra.mxu0 %v1046
        %v1097 = vpop.f32.mrf.mxu0
        %v1098 = vadd.f32 %v619, %v1097
        %v1099 = vpop.f32.mrf.mxu0
        %v1100 = vadd.f32 %v619, %v1099
        %1101 = vmatmul.bf16.gmra.mxu0 %v1048
        %v1102 = vpop.f32.mrf.mxu0
        %v1103 = vadd.f32 %v619, %v1102
        %v1104 = vpop.f32.mrf.mxu0
        %v1105 = vadd.f32 %v619, %v1104
        %1106 = vdwg.mxu0
        %1107 = vmatpush.bf16.msra.mxu0 %v753
        %1108 = vmatpush.bf16.msra.mxu0 %v751
        %1109 = vmatpush.bf16.msra.mxu0 %v749
        %1110 = vmatpush.bf16.msra.mxu0 %v747
        %1111 = vmatpush.bf16.msra.mxu0 %v745
        %1112 = vmatpush.bf16.msra.mxu0 %v743
        %1113 = vmatpush.bf16.msra.mxu0 %v741
        %1114 = vmatpush.bf16.msra.mxu0 %v739
        %1115 = vmatmul.bf16.gmra.mxu0 %v1047
        %v1116 = vpop.f32.mrf.mxu0
        %v1117 = vadd.f32 %v1098, %v1116
        %v1118 = vpop.f32.mrf.mxu0
        %v1119 = vadd.f32 %v1100, %v1118
        %1120 = vmatmul.bf16.gmra.mxu0 %v1049
        %v1121 = vpop.f32.mrf.mxu0
        %v1122 = vadd.f32 %v1103, %v1121
        %v1123 = vpop.f32.mrf.mxu0
        %v1124 = vadd.f32 %v1105, %v1123
        %1125 = vdwg.mxu0
        %v1126 = vmax.f32 %v1079, 0.0
        %v1127 = vmax.f32 %v1117, 0.0
        %v1128 = vmax.f32 %v1081, 0.0
        %v1129 = vmax.f32 %v1119, 0.0
        %v1130 = vmax.f32 %v1084, 0.0
        %v1131 = vmax.f32 %v1122, 0.0
        %v1132 = vmax.f32 %v1086, 0.0
        %v1133 = vmax.f32 %v1124, 0.0
        %v1134 = vpack.c.bf16 %v1128, %v1126
        %v1135 = vpack.c.bf16 %v1129, %v1127
        %v1136 = vpack.c.bf16 %v1132, %v1130
        %v1137 = vpack.c.bf16 %v1133, %v1131
        %1138 = vmatpush.bf16.msra.mxu0 %v736
        %1139 = vmatpush.bf16.msra.mxu0 %v734
        %1140 = vmatpush.bf16.msra.mxu0 %v732
        %1141 = vmatpush.bf16.msra.mxu0 %v730
        %1142 = vmatpush.bf16.msra.mxu0 %v728
        %1143 = vmatpush.bf16.msra.mxu0 %v726
        %1144 = vmatpush.bf16.msra.mxu0 %v724
        %1145 = vmatpush.bf16.msra.mxu0 %v722
        %1146 = vmatmul.bf16.gmra.mxu0 %v1134
        %v1147 = vpop.f32.mrf.mxu0
        %v1148 = vadd.f32 %v618, %v1147
        %v1149 = vpop.f32.mrf.mxu0
        %v1150 = vadd.f32 %v618, %v1149
        %1151 = vmatmul.bf16.gmra.mxu0 %v1136
        %v1152 = vpop.f32.mrf.mxu0
        %v1153 = vadd.f32 %v618, %v1152
        %v1154 = vpop.f32.mrf.mxu0
        %v1155 = vadd.f32 %v618, %v1154
        %1156 = vdwg.mxu0
        %1157 = vmatpush.bf16.msra.mxu0 %v752
        %1158 = vmatpush.bf16.msra.mxu0 %v750
        %1159 = vmatpush.bf16.msra.mxu0 %v748
        %1160 = vmatpush.bf16.msra.mxu0 %v746
        %1161 = vmatpush.bf16.msra.mxu0 %v744
        %1162 = vmatpush.bf16.msra.mxu0 %v742
        %1163 = vmatpush.bf16.msra.mxu0 %v740
        %1164 = vmatpush.bf16.msra.mxu0 %v738
        %1165 = vmatmul.bf16.gmra.mxu0 %v1135
        %v1166 = vpop.f32.mrf.mxu0
        %v1167 = vadd.f32 %v1148, %v1166
        %v1168 = vpop.f32.mrf.mxu0
        %v1169 = vadd.f32 %v1150, %v1168
        %1170 = vmatmul.bf16.gmra.mxu0 %v1137
        %v1171 = vpop.f32.mrf.mxu0
        %v1172 = vadd.f32 %v1153, %v1171
        %v1173 = vpop.f32.mrf.mxu0
        %v1174 = vadd.f32 %v1155, %v1173
        %1175 = vdwg.mxu0
        %1176 = vmatpush.bf16.msra.mxu0 %v737
        %1177 = vmatpush.bf16.msra.mxu0 %v735
        %1178 = vmatpush.bf16.msra.mxu0 %v733
        %1179 = vmatpush.bf16.msra.mxu0 %v731
        %1180 = vmatpush.bf16.msra.mxu0 %v729
        %1181 = vmatpush.bf16.msra.mxu0 %v727
        %1182 = vmatpush.bf16.msra.mxu0 %v725
        %1183 = vmatpush.bf16.msra.mxu0 %v723
        %1184 = vmatmul.bf16.gmra.mxu0 %v1134
        %v1185 = vpop.f32.mrf.mxu0
        %v1186 = vadd.f32 %v619, %v1185
        %v1187 = vpop.f32.mrf.mxu0
        %v1188 = vadd.f32 %v619, %v1187
        %1189 = vmatmul.bf16.gmra.mxu0 %v1136
        %v1190 = vpop.f32.mrf.mxu0
        %v1191 = vadd.f32 %v619, %v1190
        %v1192 = vpop.f32.mrf.mxu0
        %v1193 = vadd.f32 %v619, %v1192
        %1194 = vdwg.mxu0
        %1195 = vmatpush.bf16.msra.mxu0 %v753
        %1196 = vmatpush.bf16.msra.mxu0 %v751
        %1197 = vmatpush.bf16.msra.mxu0 %v749
        %1198 = vmatpush.bf16.msra.mxu0 %v747
        %1199 = vmatpush.bf16.msra.mxu0 %v745
        %1200 = vmatpush.bf16.msra.mxu0 %v743
        %1201 = vmatpush.bf16.msra.mxu0 %v741
        %1202 = vmatpush.bf16.msra.mxu0 %v739
        %1203 = vmatmul.bf16.gmra.mxu0 %v1135
        %v1204 = vpop.f32.mrf.mxu0
        %v1205 = vadd.f32 %v1186, %v1204
        %v1206 = vpop.f32.mrf.mxu0
        %v1207 = vadd.f32 %v1188, %v1206
        %1208 = vmatmul.bf16.gmra.mxu0 %v1137
        %v1209 = vpop.f32.mrf.mxu0
        %v1210 = vadd.f32 %v1191, %v1209
        %v1211 = vpop.f32.mrf.mxu0
        %v1212 = vadd.f32 %v1193, %v1211
        %1213 = vdwg.mxu0
        %v1214 = vmax.f32 %v1167, 0.0
        %v1215 = vmax.f32 %v1205, 0.0
        %v1216 = vmax.f32 %v1169, 0.0
        %v1217 = vmax.f32 %v1207, 0.0
        %v1218 = vmax.f32 %v1172, 0.0
        %v1219 = vmax.f32 %v1210, 0.0
        %v1220 = vmax.f32 %v1174, 0.0
        %v1221 = vmax.f32 %v1212, 0.0
        %v1222 = vpack.c.bf16 %v1216, %v1214
        %v1223 = vpack.c.bf16 %v1217, %v1215
        %v1224 = vpack.c.bf16 %v1220, %v1218
        %v1225 = vpack.c.bf16 %v1221, %v1219
        %v1226 = vld [vmem:[%s6] sm:$0xf]
        %v1227 = vld [vmem:[%s6 + $0x4] sm:$0xf]
        %v1228 = vld [vmem:[%s6 + $0x8] sm:$0xf]
        %v1229 = vld [vmem:[%s6 + $0xc] sm:$0xf]
        %v1230 = vld [vmem:[%s6 + $0x10] sm:$0xf]
        %v1231 = vld [vmem:[%s6 + $0x14] sm:$0xf]
        %v1232 = vld [vmem:[%s6 + $0x18] sm:$0xf]
        %v1233 = vld [vmem:[%s6 + $0x1c] sm:$0xf]
        %v1234 = vld [vmem:[%s6 + $0x20] sm:$0xf]
        %v1235 = vld [vmem:[%s6 + $0x24] sm:$0xf]
        %v1236 = vld [vmem:[%s6 + $0x28] sm:$0xf]
        %v1237 = vld [vmem:[%s6 + $0x2c] sm:$0xf]
        %v1238 = vld [vmem:[%s6 + $0x30] sm:$0xf]
        %v1239 = vld [vmem:[%s6 + $0x34] sm:$0xf]
        %v1240 = vld [vmem:[%s6 + $0x38] sm:$0xf]
        %v1241 = vld [vmem:[%s6 + $0x3c] sm:$0xf]
        %v1242 = vld [vmem:[%s6 + $0x40] sm:$0xf]
        %v1243 = vld [vmem:[%s6 + $0x44] sm:$0xf]
        %v1244 = vld [vmem:[%s6 + $0x48] sm:$0xf]
        %v1245 = vld [vmem:[%s6 + $0x4c] sm:$0xf]
        %v1246 = vld [vmem:[%s6 + $0x50] sm:$0xf]
        %v1247 = vld [vmem:[%s6 + $0x54] sm:$0xf]
        %v1248 = vld [vmem:[%s6 + $0x58] sm:$0xf]
        %v1249 = vld [vmem:[%s6 + $0x5c] sm:$0xf]
        %v1250 = vld [vmem:[%s6 + $0x60] sm:$0xf]
        %v1251 = vld [vmem:[%s6 + $0x64] sm:$0xf]
        %v1252 = vld [vmem:[%s6 + $0x68] sm:$0xf]
        %v1253 = vld [vmem:[%s6 + $0x6c] sm:$0xf]
        %v1254 = vld [vmem:[%s6 + $0x70] sm:$0xf]
        %v1255 = vld [vmem:[%s6 + $0x74] sm:$0xf]
        %v1256 = vld [vmem:[%s6 + $0x78] sm:$0xf]
        %v1257 = vld [vmem:[%s6 + $0x7c] sm:$0xf]
        %v1258 = vld [vmem:[%s7] sm:$0x1]
        %v1260 = vperm.slane %v1258, 0
        %v1294 = vunpack.c.l.b16 %v1226
        %v1295 = vunpack.c.l.b16 %v1227
        %v1296 = vunpack.c.l.b16 %v1228
        %v1297 = vunpack.c.l.b16 %v1229
        %v1298 = vunpack.c.l.b16 %v1230
        %v1299 = vunpack.c.l.b16 %v1231
        %v1300 = vunpack.c.l.b16 %v1232
        %v1301 = vunpack.c.l.b16 %v1233
        %v1302 = vunpack.c.l.b16 %v1234
        %v1303 = vunpack.c.l.b16 %v1235
        %v1304 = vunpack.c.l.b16 %v1236
        %v1305 = vunpack.c.l.b16 %v1237
        %v1306 = vunpack.c.l.b16 %v1238
        %v1307 = vunpack.c.l.b16 %v1239
        %v1308 = vunpack.c.l.b16 %v1240
        %v1309 = vunpack.c.l.b16 %v1241
        %v1310 = vunpack.c.l.b16 %v1242
        %v1311 = vunpack.c.l.b16 %v1243
        %v1312 = vunpack.c.l.b16 %v1244
        %v1313 = vunpack.c.l.b16 %v1245
        %v1314 = vunpack.c.l.b16 %v1246
        %v1315 = vunpack.c.l.b16 %v1247
        %v1316 = vunpack.c.l.b16 %v1248
        %v1317 = vunpack.c.l.b16 %v1249
        %v1318 = vunpack.c.l.b16 %v1250
        %v1319 = vunpack.c.l.b16 %v1251
        %v1320 = vunpack.c.l.b16 %v1252
        %v1321 = vunpack.c.l.b16 %v1253
        %v1322 = vunpack.c.l.b16 %v1254
        %v1323 = vunpack.c.l.b16 %v1255
        %v1324 = vunpack.c.l.b16 %v1256
        %v1325 = vunpack.c.l.b16 %v1257
        %v1326 = vpack.c.b16 %v1295, %v1294
        %v1327 = vpack.c.b16 %v1297, %v1296
        %v1328 = vpack.c.b16 %v1299, %v1298
        %v1329 = vpack.c.b16 %v1301, %v1300
        %v1330 = vpack.c.b16 %v1303, %v1302
        %v1331 = vpack.c.b16 %v1305, %v1304
        %v1332 = vpack.c.b16 %v1307, %v1306
        %v1333 = vpack.c.b16 %v1309, %v1308
        %v1334 = vpack.c.b16 %v1311, %v1310
        %v1335 = vpack.c.b16 %v1313, %v1312
        %v1336 = vpack.c.b16 %v1315, %v1314
        %v1337 = vpack.c.b16 %v1317, %v1316
        %v1338 = vpack.c.b16 %v1319, %v1318
        %v1339 = vpack.c.b16 %v1321, %v1320
        %v1340 = vpack.c.b16 %v1323, %v1322
        %v1341 = vpack.c.b16 %v1325, %v1324
        %1358 = vmatpush.bf16.msra.mxu0 %v1333
        %1359 = vmatpush.bf16.msra.mxu0 %v1332
        %1360 = vmatpush.bf16.msra.mxu0 %v1331
        %1361 = vmatpush.bf16.msra.mxu0 %v1330
        %1362 = vmatpush.bf16.msra.mxu0 %v1329
        %1363 = vmatpush.bf16.msra.mxu0 %v1328
        %1364 = vmatpush.bf16.msra.mxu0 %v1327
        %1365 = vmatpush.bf16.msra.mxu0 %v1326
        %1366 = vmatmul.bf16.gmra.mxu0 %v1222
        %v1367 = vpop.f32.mrf.mxu0
        %v1368 = vadd.f32 %v1260, %v1367
        %v1369 = vpop.f32.mrf.mxu0
        %v1370 = vadd.f32 %v1260, %v1369
        %1371 = vmatmul.bf16.gmra.mxu0 %v1224
        %v1372 = vpop.f32.mrf.mxu0
        %v1373 = vadd.f32 %v1260, %v1372
        %v1374 = vpop.f32.mrf.mxu0
        %v1375 = vadd.f32 %v1260, %v1374
        %1376 = vdwg.mxu0
        %1377 = vmatpush.bf16.msra.mxu0 %v1341
        %1378 = vmatpush.bf16.msra.mxu0 %v1340
        %1379 = vmatpush.bf16.msra.mxu0 %v1339
        %1380 = vmatpush.bf16.msra.mxu0 %v1338
        %1381 = vmatpush.bf16.msra.mxu0 %v1337
        %1382 = vmatpush.bf16.msra.mxu0 %v1336
        %1383 = vmatpush.bf16.msra.mxu0 %v1335
        %1384 = vmatpush.bf16.msra.mxu0 %v1334
        %1385 = vmatmul.bf16.gmra.mxu0 %v1223
        %v1386 = vpop.f32.mrf.mxu0
        %v1387 = vadd.f32 %v1368, %v1386
        %v1388 = vpop.f32.mrf.mxu0
        %v1389 = vadd.f32 %v1370, %v1388
        %1390 = vmatmul.bf16.gmra.mxu0 %v1225
        %v1391 = vpop.f32.mrf.mxu0
        %v1392 = vadd.f32 %v1373, %v1391
        %v1393 = vpop.f32.mrf.mxu0
        %v1394 = vadd.f32 %v1375, %v1393
        %1395 = vdwg.mxu0
        %vm1396 = vcmask 261120
        %v1397 = vsel %vm1396, %v1387, -inf
        %1398 = vmax.xlane.f32.xlu0 %v1397
        %v1399 = vpop.xlane.xlu0 %1398
        %v1400 = vsel %vm1396, %v1389, -inf
        %1401 = vmax.xlane.f32.xlu0 %v1400
        %v1402 = vpop.xlane.xlu0 %1401
        %v1403 = vsel %vm1396, %v1392, -inf
        %1404 = vmax.xlane.f32.xlu0 %v1403
        %v1405 = vpop.xlane.xlu0 %1404
        %v1406 = vsel %vm1396, %v1394, -inf
        %1407 = vmax.xlane.f32.xlu0 %v1406
        %v1408 = vpop.xlane.xlu0 %1407
        %v1409 = vsub.f32 %v1387, %v1399
        %v1410 = vsub.f32 %v1389, %v1402
        %v1411 = vsub.f32 %v1392, %v1405
        %v1412 = vsub.f32 %v1394, %v1408
        %v1413 = vmul.f32 %v1409, 1.442695
        %v1414 = vpow.pop %v1413
        %v1415 = vmul.f32 %v1410, 1.442695
        %v1416 = vpow.pop %v1415
        %v1417 = vmul.f32 %v1411, 1.442695
        %v1418 = vpow.pop %v1417
        %v1419 = vmul.f32 %v1412, 1.442695
        %v1420 = vpow.pop %v1419
        %v1421 = vld [vmem:[%s8] sm:$0xff]
        %v1422 = vld [vmem:[%s8 + $0x8] sm:$0xff]
        %v1423 = vld [vmem:[%s8 + $0x10] sm:$0xff]
        %v1424 = vld [vmem:[%s8 + $0x18] sm:$0xff]
        %v1426 = vsel %vm1396, %v1414, 0
        %v1429 = vsel %vm1396, %v1416, 0
        %v1432 = vsel %vm1396, %v1418, 0
        %v1435 = vsel %vm1396, %v1420, 0
        %1437 = vmatpush.msra.mxu0 0.0
        %1438 = vmatpush.msra.mxu0 0.0
        %1439 = vmatpush.msra.mxu0 0.0
        %1440 = vmatpush.msra.mxu0 0.0
        %1441 = vmatpush.msra.mxu0 0.0
        %1442 = vmatpush.msra.mxu0 0.0
        %1443 = vmatpush.msra.mxu0 0.0
        %1444 = vmatpush.msra.mxu0 0.0
        %1445 = vmatpush.msra.mxu0 0.0
        %1446 = vmatpush.msra.mxu0 0.0
        %1447 = vmatpush.msra.mxu0 0.0
        %1448 = vmatpush.msra.mxu0 0.0
        %1449 = vmatpush.msra.mxu0 %v1424
        %1450 = vmatpush.msra.mxu0 %v1423
        %1451 = vmatpush.msra.mxu0 %v1422
        %1452 = vmatpush.msra.mxu0 %v1421
        %1453 = vmatmul.f32.gmra.mxu0 %v1426
        %v1454 = vpop.f32.mrf.mxu0
        %v1455 = vadd.f32 0.0, %v1454
        %1456 = vmatmul.f32.gmra.mxu0 %v1429
        %v1457 = vpop.f32.mrf.mxu0
        %v1458 = vadd.f32 0.0, %v1457
        %1459 = vmatmul.f32.gmra.mxu0 %v1432
        %v1460 = vpop.f32.mrf.mxu0
        %v1461 = vadd.f32 0.0, %v1460
        %1462 = vmatmul.f32.gmra.mxu0 %v1435
        %v1463 = vpop.f32.mrf.mxu0
        %v1464 = vadd.f32 0.0, %v1463
        %1465 = vdwg.mxu0
        %v1466 = vmax.f32 %v1455, 1e-30
        %v1467 = vmax.f32 %v1458, 1e-30
        %v1468 = vmax.f32 %v1461, 1e-30
        %v1469 = vmax.f32 %v1464, 1e-30
        %v1470 = vrcp.pop %v1466
        %v1471 = vrcp.pop %v1467
        %v1472 = vrcp.pop %v1468
        %v1473 = vrcp.pop %v1469
        %v1474 = vmul.f32 %v1414, %v1470
        %v1475 = vmul.f32 %v1416, %v1471
        %v1476 = vmul.f32 %v1418, %v1472
        %v1477 = vmul.f32 %v1420, %v1473
        %1478 = vst.msk [vmem:[%s401] sm:$0xff] %vm1396, %v1474
        %1479 = vst.msk [vmem:[%s401 + $0x8] sm:$0xff] %vm1396, %v1475
        %1480 = vst.msk [vmem:[%s401 + $0x10] sm:$0xff] %vm1396, %v1476
        %1481 = vst.msk [vmem:[%s401 + $0x18] sm:$0xff] %vm1396, %v1477
        %s1482 = smul.u32 4, %s25
        %p1483 = scmp.lt.s32.totalorder %s1482, 7
        %s1484 = scalar_select %p1483, %s1482, 7
        %s1485 = smul.addr %s1484, 8
        %s1486 = scalar_lea.vmem %s9, %s1485
        // Predicated region
        $region73: #{tpu_custom_call.1} parent=55 // pred_check
          %p1487 = pneg %p237
        $region74: #{tpu_custom_call.1} parent=55 // pred_check_branch
          %1489 = sbr.rel (%p1487) target = $region76
        $region75: #{tpu_custom_call.1} parent=55 // pred_region
          %s1490 = smul.u32 4, %s25
        $region76: #{tpu_custom_call.1} parent=55 // pred_fallthru
          _
      $region56: #{tpu_custom_call.1} parent=5 // pred_fallthru
        _
      %p1491 = scmp.le.s32.totalorder 2, %s20
      // Predicated region
      $region77: #{tpu_custom_call.1} parent=5 // pred_check
        %p1492 = pneg %p1491
      $region78: #{tpu_custom_call.1} parent=5 // pred_check_branch
        %1494 = sbr.rel (%p1492) target = $region80
      $region79: #{tpu_custom_call.1} parent=5 // pred_region
        %s1495 = ssub.s32 %s20, 2
        // Predicated region
        $region81: #{tpu_custom_call.1} parent=79 // pred_check
          %p1496 = pneg %p243
        $region82: #{tpu_custom_call.1} parent=79 // pred_check_branch
          %1498 = sbr.rel (%p1496) target = $region84
        $region83: #{tpu_custom_call.1} parent=79 // pred_region
          %s1499 = smul.u32 4, %s26
          %p1500 = scmp.lt.s32.totalorder %s1499, 7
          %s1501 = scalar_select %p1500, %s1499, 7
          %s1502 = smul.addr %s1501, 8
          %s1503 = scalar_lea.vmem %s9, %s1502
        $region84: #{tpu_custom_call.1} parent=79 // pred_fallthru
          _
      $region80: #{tpu_custom_call.1} parent=5 // pred_fallthru
        _
    $region6: #{tpu_custom_call.1} parent=1 // loop_footer
      %s24 = sadd.s32 1, %s20
    $region7: #{tpu_custom_call.1} parent=1 // loop_footer_branch
      %19 = sbr.rel target = $region3
    $region8: #{tpu_custom_call.1} parent=1 // loop_exit
      _
    %1504 = vsyncpa [#allocation3], 1
    %s1505 = scalar_lea.sflag [#allocation3], 1
    %1506 = vsyncpa %s1505, 1
    %1507 = vsyncpa [#allocation5], 1
    %s1508 = scalar_lea.sflag [#allocation5], 1
    %1509 = vsyncpa %s1508, 1
    %1510 = vsyncpa [#allocation8], 1

</llo_original>
